<compile_context>
chip_gen: v5e
topology: v5e:2x2
jax: 0.10.0
libtpu: 0.0.40
codegen_flags: <defaults>
</compile_context>

<pallas_src>
import jax
import jax.numpy as jnp
from jax.experimental import pallas as pl
from jax.experimental.pallas import tpu as pltpu

IN_DIM = 784
HID_DIM = 512
OUT_DIM = 10

IN_PAD = 896    # 7 * 128  (K dim of first matmul, lane-aligned)
OUT_PAD = 128   # lane-dense output width; wrapper slices back to 10


def _round_up(x, m):
    return (x + m - 1) // m * m


def mlp_kernel(x_ref, w1_ref, b1_ref, w2_ref, b2_ref, o_ref):
    # Linear(784 -> 512): bf16 operands, f32 accumulation on the MXU.
    h = jnp.dot(x_ref[...], w1_ref[...], preferred_element_type=jnp.float32)
    # Bias + Tanh in f32 (tanh goes to the EUP; bias add on the VPU).
    h = jnp.tanh(h + b1_ref[...])
    # Linear(512 -> 128 padded): bf16 operands into the MXU, f32 accumulate.
    out = jnp.dot(h.astype(jnp.bfloat16), w2_ref[...],
                  preferred_element_type=jnp.float32)
    # Lane-dense (TB, 128) store — unmasked vst, no vst.msk partial stores.
    o_ref[...] = (out + b2_ref[...]).astype(o_ref.dtype)


@jax.jit
def mlp_forward(x, w1, b1, w2, b2):
    """x: [B, 784] f32; w1: [784, 512]; b1: [1, 512]; w2: [512, 10]; b2: [1, 10]."""
    B = x.shape[0]
    TB = min(512, _round_up(B, 8))           # batch tile per grid step
    B_pad = _round_up(B, TB)

    # Cast to bf16 first, then pad: halves the pad-copy bytes. Zero padding
    # keeps the matmul math exact. Weights padded/cast once per call (tiny).
    x_p = (jnp.zeros((B_pad, IN_PAD), jnp.bfloat16)
           .at[:B, :IN_DIM].set(x.astype(jnp.bfloat16)))
    w1_p = (jnp.zeros((IN_PAD, HID_DIM), jnp.bfloat16)
            .at[:IN_DIM, :].set(w1.astype(jnp.bfloat16)))
    w2_p = (jnp.zeros((HID_DIM, OUT_PAD), jnp.bfloat16)
            .at[:, :OUT_DIM].set(w2.astype(jnp.bfloat16)))
    b2_p = jnp.zeros((1, OUT_PAD), jnp.float32).at[:, :OUT_DIM].set(b2)

    grid = (B_pad // TB,)
    cost = pl.CostEstimate(
        flops=2 * B_pad * (IN_PAD * HID_DIM + HID_DIM * OUT_PAD),
        transcendentals=B_pad * HID_DIM,
        bytes_accessed=(x_p.size * 2 + w1_p.size * 2 + w2_p.size * 2
                        + (b1.size + b2_p.size) * 4 + B_pad * OUT_PAD * 4),
    )

    out = pl.pallas_call(
        mlp_kernel,
        out_shape=jax.ShapeDtypeStruct((B_pad, OUT_PAD), jnp.float32),
        grid_spec=pltpu.PrefetchScalarGridSpec(
            num_scalar_prefetch=0,
            grid=grid,
            in_specs=[
                pl.BlockSpec((TB, IN_PAD), lambda i: (i, 0)),        # x tile (pipelined)
                pl.BlockSpec((IN_PAD, HID_DIM), lambda i: (0, 0)),   # W1 resident
                pl.BlockSpec((1, HID_DIM), lambda i: (0, 0)),        # b1 resident
                pl.BlockSpec((HID_DIM, OUT_PAD), lambda i: (0, 0)),  # W2 resident
                pl.BlockSpec((1, OUT_PAD), lambda i: (0, 0)),        # b2 resident
            ],
            out_specs=pl.BlockSpec((TB, OUT_PAD), lambda i: (i, 0)),
        ),
        compiler_params=pltpu.CompilerParams(
            dimension_semantics=("parallel",),   # shards batch tiles across TCs on v7x
            vmem_limit_bytes=32 * 1024 * 1024,   # safe within v7x's 64 MiB VMEM
        ),
        cost_estimate=cost,
    )(x_p, w1_p, b1, w2_p, b2_p)

    return out[:B, :OUT_DIM]


def init_params(key):
    # Deterministic init mimicking PyTorch's default uniform(-1/sqrt(fan_in), 1/sqrt(fan_in)).
    k1, k2, k3, k4 = jax.random.split(key, 4)
    bound1 = 1.0 / jnp.sqrt(IN_DIM)
    bound2 = 1.0 / jnp.sqrt(HID_DIM)
    w1 = jax.random.uniform(k1, (IN_DIM, HID_DIM), jnp.float32, -bound1, bound1)
    b1 = jax.random.uniform(k2, (1, HID_DIM), jnp.float32, -bound1, bound1)
    w2 = jax.random.uniform(k3, (HID_DIM, OUT_DIM), jnp.float32, -bound2, bound2)
    b2 = jax.random.uniform(k4, (1, OUT_DIM), jnp.float32, -bound2, bound2)
    return w1, b1, w2, b2


if __name__ == "__main__":
    key = jax.random.PRNGKey(0)
    kx, kp = jax.random.split(key)
    B = 8
    x = jax.random.normal(kx, (B, IN_DIM), jnp.float32)
    w1, b1, w2, b2 = init_params(kp)

    logits = mlp_forward(x, w1, b1, w2, b2)
    jax.block_until_ready(logits)
    assert logits.shape == (B, OUT_DIM)

    # Reference with matched bf16 rounding of matmul operands (tight check).
    def _bf(a):
        return a.astype(jnp.bfloat16).astype(jnp.float32)
    h_ref = jnp.tanh(_bf(x) @ _bf(w1) + b1)
    ref_bf16 = _bf(h_ref) @ _bf(w2) + b2
    assert jnp.allclose(logits, ref_bf16, atol=1e-2, rtol=1e-2)

    # Pure f32 reference (loose check — bf16 matmul inputs).
    ref_f32 = jnp.tanh(x @ w1 + b1) @ w2 + b2
    assert jnp.allclose(logits, ref_f32, atol=5e-2, rtol=5e-2)

    print("KERNEL_OK")
</pallas_src>

<mosaic_0001>
module attributes {stable_mosaic.version = 11 : i64} {
  func.func @mlp_kernel(%arg0: i32, %arg1: memref<8x896xbf16, #tpu.memory_space<vmem>>, %arg2: memref<896x512xbf16, #tpu.memory_space<vmem>>, %arg3: memref<1x512xf32, #tpu.memory_space<vmem>>, %arg4: memref<512x128xbf16, #tpu.memory_space<vmem>>, %arg5: memref<1x128xf32, #tpu.memory_space<vmem>>, %arg6: memref<8x128xf32, #tpu.memory_space<vmem>>) attributes {dimension_semantics = [#tpu.dimension_semantics<parallel>], iteration_bounds = array<i64: 1>, scalar_prefetch = 0 : i64, scratch_operands = 0 : i64, tpu.core_type = #tpu.core_type<tc>, window_params = [{transform_indices = @transform_0, window_bounds = array<i64: 8, 896>}, {pipeline_mode = #tpu.pipeline_mode<synchronous>, transform_indices = @transform_1, window_bounds = array<i64: 896, 512>}, {pipeline_mode = #tpu.pipeline_mode<synchronous>, transform_indices = @transform_2, window_bounds = array<i64: 1, 512>}, {pipeline_mode = #tpu.pipeline_mode<synchronous>, transform_indices = @transform_3, window_bounds = array<i64: 512, 128>}, {pipeline_mode = #tpu.pipeline_mode<synchronous>, transform_indices = @transform_4, window_bounds = array<i64: 1, 128>}, {transform_indices = @transform_5, window_bounds = array<i64: 8, 128>}]} {
    %c0 = arith.constant 0 : index
    %c0_0 = arith.constant 0 : index
    %0 = vector.load %arg1[%c0, %c0_0] : memref<8x896xbf16, #tpu.memory_space<vmem>>, vector<8x896xbf16>
    %c0_1 = arith.constant 0 : index
    %c0_2 = arith.constant 0 : index
    %1 = vector.load %arg2[%c0_1, %c0_2] : memref<896x512xbf16, #tpu.memory_space<vmem>>, vector<896x512xbf16>
    %cst = arith.constant dense<0.000000e+00> : vector<8x512xf32>
    %2 = tpu.matmul %0, %1, %cst {dimension_numbers = #tpu.dot_dimension_numbers<[1], [0], [0], [1], [0, 0, 1, 1], [], []>} : vector<8x896xbf16>, vector<896x512xbf16>, vector<8x512xf32> -> vector<8x512xf32>
    %c0_3 = arith.constant 0 : index
    %c0_4 = arith.constant 0 : index
    %3 = vector.load %arg3[%c0_3, %c0_4] : memref<1x512xf32, #tpu.memory_space<vmem>>, vector<1x512xf32>
    %4 = vector.broadcast %3 : vector<1x512xf32> to vector<8x512xf32>
    %5 = arith.addf %2, %4 : vector<8x512xf32>
    %6 = math.tanh %5 : vector<8x512xf32>
    %7 = arith.truncf %6 : vector<8x512xf32> to vector<8x512xbf16>
    %c0_5 = arith.constant 0 : index
    %c0_6 = arith.constant 0 : index
    %8 = vector.load %arg4[%c0_5, %c0_6] : memref<512x128xbf16, #tpu.memory_space<vmem>>, vector<512x128xbf16>
    %cst_7 = arith.constant dense<0.000000e+00> : vector<8x128xf32>
    %9 = tpu.matmul %7, %8, %cst_7 {dimension_numbers = #tpu.dot_dimension_numbers<[1], [0], [0], [1], [0, 0, 1, 1], [], []>} : vector<8x512xbf16>, vector<512x128xbf16>, vector<8x128xf32> -> vector<8x128xf32>
    %c0_8 = arith.constant 0 : index
    %c0_9 = arith.constant 0 : index
    %10 = vector.load %arg5[%c0_8, %c0_9] : memref<1x128xf32, #tpu.memory_space<vmem>>, vector<1x128xf32>
    %11 = vector.broadcast %10 : vector<1x128xf32> to vector<8x128xf32>
    %12 = arith.addf %9, %11 : vector<8x128xf32>
    %c0_10 = arith.constant 0 : index
    %c0_11 = arith.constant 0 : index
    %13 = vector.load %arg6[%c0_10, %c0_11] : memref<8x128xf32, #tpu.memory_space<vmem>>, vector<8x128xf32>
    tpu.vector_store %arg6[%c0_10, %c0_11], %12 {strides = array<i32>} : memref<8x128xf32, #tpu.memory_space<vmem>>, vector<8x128xf32>,
    return
  }
  func.func @transform_0(%arg0: i32) -> (i32, i32) {
    %c0_i32 = arith.constant 0 : i32
    %c0_i32_0 = arith.constant 0 : i32
    return %arg0, %c0_i32 : i32, i32
  }
  func.func @transform_1(%arg0: i32) -> (i32, i32) {
    %c0_i32 = arith.constant 0 : i32
    %c0_i32_0 = arith.constant 0 : i32
    %c0_i32_1 = arith.constant 0 : i32
    return %c0_i32, %c0_i32_0 : i32, i32
  }
  func.func @transform_2(%arg0: i32) -> (i32, i32) {
    %c0_i32 = arith.constant 0 : i32
    %c0_i32_0 = arith.constant 0 : i32
    %c0_i32_1 = arith.constant 0 : i32
    return %c0_i32, %c0_i32_0 : i32, i32
  }
  func.func @transform_3(%arg0: i32) -> (i32, i32) {
    %c0_i32 = arith.constant 0 : i32
    %c0_i32_0 = arith.constant 0 : i32
    %c0_i32_1 = arith.constant 0 : i32
    return %c0_i32, %c0_i32_0 : i32, i32
  }
  func.func @transform_4(%arg0: i32) -> (i32, i32) {
    %c0_i32 = arith.constant 0 : i32
    %c0_i32_0 = arith.constant 0 : i32
    %c0_i32_1 = arith.constant 0 : i32
    return %c0_i32, %c0_i32_0 : i32, i32
  }
  func.func @transform_5(%arg0: i32) -> (i32, i32) {
    %c0_i32 = arith.constant 0 : i32
    %c0_i32_0 = arith.constant 0 : i32
    return %arg0, %c0_i32 : i32, i32
  }
}

</mosaic_0001>

<llo_original>
// kernel: mlp_forward.1
$region0: #{mlp_forward.1}
  #allocation0 [shape = 'u32[]', space=smem, size = 0x4, offset = 0x4, fixed_abs, tag = 'smem constant byte address 0x4 - core index']
  #allocation1 [shape = 'u32[72,128]{1,0:T(1,128)}', space=vmem, size = 0x9000, scoped, tag = 'internal scratch']
  %s0 = inlined_call_operand.vmem [shape: bf16[8,896], index: 0, kind: input, shape index: {}]
  %s1 = inlined_call_operand.vmem [shape: bf16[896,512], index: 1, kind: input, shape index: {}]
  %s2 = inlined_call_operand.vmem [shape: f32[1,512], index: 2, kind: input, shape index: {}]
  %s3 = inlined_call_operand.vmem [shape: bf16[512,128], index: 3, kind: input, shape index: {}]
  %s4 = inlined_call_operand.vmem [shape: f32[1,128], index: 4, kind: input, shape index: {}]
  %s5 = inlined_call_operand.hbm [shape: f32[8,128], index: 5, kind: output, shape index: {}]
  %s6 = sld [smem:[#allocation0]]
  $region30: #{mlp_forward.1} parent=0
    _
  %s8 = ssub.s32 1, %s6
  %s9 = scalar_select 0, %s8, %s6
  $region1: #{mlp_forward.1} parent=0
    #allocation2 [shape = 'u8[4096]{0}', space=vmem, size = 0x1000, scoped, tag = 'output window, operand 0, single buffered']
    #allocation3 [shape = 's32[1]{0}', space=sflag, size = 0x4, scoped, tag = 'scoped memory for mlp_forward.1']
    %10 = vsyncpa [#allocation3], 0
    // Predicated region
    $region2: #{mlp_forward.1} parent=1 // pred_check
      _
    $region3: #{mlp_forward.1} parent=1 // pred_check_branch
      %12 = sbr.rel (0) target = $region5
    $region4: #{mlp_forward.1} parent=1 // pred_region
      _
    $region5: #{mlp_forward.1} parent=1 // pred_fallthru
      _
    // Predicated region
    $region6: #{mlp_forward.1} parent=1 // pred_check
      _
    $region7: #{mlp_forward.1} parent=1 // pred_check_branch
      %14 = sbr.rel (0) target = $region9
    $region8: #{mlp_forward.1} parent=1 // pred_region
      _
    $region9: #{mlp_forward.1} parent=1 // pred_fallthru
      _
    // Predicated region
    $region10: #{mlp_forward.1} parent=1 // pred_check
      _
    $region11: #{mlp_forward.1} parent=1 // pred_check_branch
      %16 = sbr.rel (0) target = $region13
    $region12: #{mlp_forward.1} parent=1 // pred_region
      _
    $region13: #{mlp_forward.1} parent=1 // pred_fallthru
      _
    // Predicated region
    $region14: #{mlp_forward.1} parent=1 // pred_check
      _
    $region15: #{mlp_forward.1} parent=1 // pred_check_branch
      %18 = sbr.rel (0) target = $region17
    $region16: #{mlp_forward.1} parent=1 // pred_region
      _
    $region17: #{mlp_forward.1} parent=1 // pred_fallthru
      _
    // Predicated region
    $region18: #{mlp_forward.1} parent=1 // pred_check
      _
    $region19: #{mlp_forward.1} parent=1 // pred_check_branch
      %20 = sbr.rel (0) target = $region21
    $region20: #{mlp_forward.1} parent=1 // pred_region
      _
    $region21: #{mlp_forward.1} parent=1 // pred_fallthru
      _
    %v21 = vld [vmem:[%s0] sm:$0xff]
    %v22 = vld [vmem:[%s0 + $0x8] sm:$0xff]
    %v23 = vld [vmem:[%s0 + $0x10] sm:$0xff]
    %v24 = vld [vmem:[%s0 + $0x18] sm:$0xf]
    %v25 = vld [vmem:[%s1] sm:$0xff]
    %v26 = vld [vmem:[%s1 + $0x8] sm:$0xff]
    %v27 = vld [vmem:[%s1 + $0x10] sm:$0xff]
    %v28 = vld [vmem:[%s1 + $0x18] sm:$0xff]
    %v29 = vld [vmem:[%s1 + $0x20] sm:$0xff]
    %v30 = vld [vmem:[%s1 + $0x28] sm:$0xff]
    %v31 = vld [vmem:[%s1 + $0x30] sm:$0xff]
    %v32 = vld [vmem:[%s1 + $0x38] sm:$0xff]
    %v33 = vld [vmem:[%s1 + $0x40] sm:$0xff]
    %v34 = vld [vmem:[%s1 + $0x48] sm:$0xff]
    %v35 = vld [vmem:[%s1 + $0x50] sm:$0xff]
    %v36 = vld [vmem:[%s1 + $0x58] sm:$0xff]
    %v37 = vld [vmem:[%s1 + $0x60] sm:$0xff]
    %v38 = vld [vmem:[%s1 + $0x68] sm:$0xff]
    %v39 = vld [vmem:[%s1 + $0x70] sm:$0xff]
    %v40 = vld [vmem:[%s1 + $0x78] sm:$0xff]
    %v41 = vld [vmem:[%s1 + $0x80] sm:$0xff]
    %v42 = vld [vmem:[%s1 + $0x88] sm:$0xff]
    %v43 = vld [vmem:[%s1 + $0x90] sm:$0xff]
    %v44 = vld [vmem:[%s1 + $0x98] sm:$0xff]
    %v45 = vld [vmem:[%s1 + $0xa0] sm:$0xff]
    %v46 = vld [vmem:[%s1 + $0xa8] sm:$0xff]
    %v47 = vld [vmem:[%s1 + $0xb0] sm:$0xff]
    %v48 = vld [vmem:[%s1 + $0xb8] sm:$0xff]
    %v49 = vld [vmem:[%s1 + $0xc0] sm:$0xff]
    %v50 = vld [vmem:[%s1 + $0xc8] sm:$0xff]
    %v51 = vld [vmem:[%s1 + $0xd0] sm:$0xff]
    %v52 = vld [vmem:[%s1 + $0xd8] sm:$0xff]
    %v53 = vld [vmem:[%s1 + $0xe0] sm:$0xff]
    %v54 = vld [vmem:[%s1 + $0xe8] sm:$0xff]
    %v55 = vld [vmem:[%s1 + $0xf0] sm:$0xff]
    %v56 = vld [vmem:[%s1 + $0xf8] sm:$0xff]
    %v57 = vld [vmem:[%s1 + $0x100] sm:$0xff]
    %v58 = vld [vmem:[%s1 + $0x108] sm:$0xff]
    %v59 = vld [vmem:[%s1 + $0x110] sm:$0xff]
    %v60 = vld [vmem:[%s1 + $0x118] sm:$0xff]
    %v61 = vld [vmem:[%s1 + $0x120] sm:$0xff]
    %v62 = vld [vmem:[%s1 + $0x128] sm:$0xff]
    %v63 = vld [vmem:[%s1 + $0x130] sm:$0xff]
    %v64 = vld [vmem:[%s1 + $0x138] sm:$0xff]
    %v65 = vld [vmem:[%s1 + $0x140] sm:$0xff]
    %v66 = vld [vmem:[%s1 + $0x148] sm:$0xff]
    %v67 = vld [vmem:[%s1 + $0x150] sm:$0xff]
    %v68 = vld [vmem:[%s1 + $0x158] sm:$0xff]
    %v69 = vld [vmem:[%s1 + $0x160] sm:$0xff]
    %v70 = vld [vmem:[%s1 + $0x168] sm:$0xff]
    %v71 = vld [vmem:[%s1 + $0x170] sm:$0xff]
    %v72 = vld [vmem:[%s1 + $0x178] sm:$0xff]
    %v73 = vld [vmem:[%s1 + $0x180] sm:$0xff]
    %v74 = vld [vmem:[%s1 + $0x188] sm:$0xff]
    %v75 = vld [vmem:[%s1 + $0x190] sm:$0xff]
    %v76 = vld [vmem:[%s1 + $0x198] sm:$0xff]
    %v77 = vld [vmem:[%s1 + $0x1a0] sm:$0xff]
    %v78 = vld [vmem:[%s1 + $0x1a8] sm:$0xff]
    %v79 = vld [vmem:[%s1 + $0x1b0] sm:$0xff]
    %v80 = vld [vmem:[%s1 + $0x1b8] sm:$0xff]
    %v81 = vld [vmem:[%s1 + $0x1c0] sm:$0xff]
    %v82 = vld [vmem:[%s1 + $0x1c8] sm:$0xff]
    %v83 = vld [vmem:[%s1 + $0x1d0] sm:$0xff]
    %v84 = vld [vmem:[%s1 + $0x1d8] sm:$0xff]
    %v85 = vld [vmem:[%s1 + $0x1e0] sm:$0xff]
    %v86 = vld [vmem:[%s1 + $0x1e8] sm:$0xff]
    %v87 = vld [vmem:[%s1 + $0x1f0] sm:$0xff]
    %v88 = vld [vmem:[%s1 + $0x1f8] sm:$0xff]
    %v89 = vld [vmem:[%s1 + $0x200] sm:$0xff]
    %v90 = vld [vmem:[%s1 + $0x208] sm:$0xff]
    %v91 = vld [vmem:[%s1 + $0x210] sm:$0xff]
    %v92 = vld [vmem:[%s1 + $0x218] sm:$0xff]
    %v93 = vld [vmem:[%s1 + $0x220] sm:$0xff]
    %v94 = vld [vmem:[%s1 + $0x228] sm:$0xff]
    %v95 = vld [vmem:[%s1 + $0x230] sm:$0xff]
    %v96 = vld [vmem:[%s1 + $0x238] sm:$0xff]
    %v97 = vld [vmem:[%s1 + $0x240] sm:$0xff]
    %v98 = vld [vmem:[%s1 + $0x248] sm:$0xff]
    %v99 = vld [vmem:[%s1 + $0x250] sm:$0xff]
    %v100 = vld [vmem:[%s1 + $0x258] sm:$0xff]
    %v101 = vld [vmem:[%s1 + $0x260] sm:$0xff]
    %v102 = vld [vmem:[%s1 + $0x268] sm:$0xff]
    %v103 = vld [vmem:[%s1 + $0x270] sm:$0xff]
    %v104 = vld [vmem:[%s1 + $0x278] sm:$0xff]
    %v105 = vld [vmem:[%s1 + $0x280] sm:$0xff]
    %v106 = vld [vmem:[%s1 + $0x288] sm:$0xff]
    %v107 = vld [vmem:[%s1 + $0x290] sm:$0xff]
    %v108 = vld [vmem:[%s1 + $0x298] sm:$0xff]
    %v109 = vld [vmem:[%s1 + $0x2a0] sm:$0xff]
    %v110 = vld [vmem:[%s1 + $0x2a8] sm:$0xff]
    %v111 = vld [vmem:[%s1 + $0x2b0] sm:$0xff]
    %v112 = vld [vmem:[%s1 + $0x2b8] sm:$0xff]
    %v113 = vld [vmem:[%s1 + $0x2c0] sm:$0xff]
    %v114 = vld [vmem:[%s1 + $0x2c8] sm:$0xff]
    %v115 = vld [vmem:[%s1 + $0x2d0] sm:$0xff]
    %v116 = vld [vmem:[%s1 + $0x2d8] sm:$0xff]
    %v117 = vld [vmem:[%s1 + $0x2e0] sm:$0xff]
    %v118 = vld [vmem:[%s1 + $0x2e8] sm:$0xff]
    %v119 = vld [vmem:[%s1 + $0x2f0] sm:$0xff]
    %v120 = vld [vmem:[%s1 + $0x2f8] sm:$0xff]
    %v121 = vld [vmem:[%s1 + $0x300] sm:$0xff]
    %v122 = vld [vmem:[%s1 + $0x308] sm:$0xff]
    %v123 = vld [vmem:[%s1 + $0x310] sm:$0xff]
    %v124 = vld [vmem:[%s1 + $0x318] sm:$0xff]
    %v125 = vld [vmem:[%s1 + $0x320] sm:$0xff]
    %v126 = vld [vmem:[%s1 + $0x328] sm:$0xff]
    %v127 = vld [vmem:[%s1 + $0x330] sm:$0xff]
    %v128 = vld [vmem:[%s1 + $0x338] sm:$0xff]
    %v129 = vld [vmem:[%s1 + $0x340] sm:$0xff]
    %v130 = vld [vmem:[%s1 + $0x348] sm:$0xff]
    %v131 = vld [vmem:[%s1 + $0x350] sm:$0xff]
    %v132 = vld [vmem:[%s1 + $0x358] sm:$0xff]
    %v133 = vld [vmem:[%s1 + $0x360] sm:$0xff]
    %v134 = vld [vmem:[%s1 + $0x368] sm:$0xff]
    %v135 = vld [vmem:[%s1 + $0x370] sm:$0xff]
    %v136 = vld [vmem:[%s1 + $0x378] sm:$0xff]
    %v137 = vld [vmem:[%s1 + $0x380] sm:$0xff]
    %v138 = vld [vmem:[%s1 + $0x388] sm:$0xff]
    %v139 = vld [vmem:[%s1 + $0x390] sm:$0xff]
    %v140 = vld [vmem:[%s1 + $0x398] sm:$0xff]
    %v141 = vld [vmem:[%s1 + $0x3a0] sm:$0xff]
    %v142 = vld [vmem:[%s1 + $0x3a8] sm:$0xff]
    %v143 = vld [vmem:[%s1 + $0x3b0] sm:$0xff]
    %v144 = vld [vmem:[%s1 + $0x3b8] sm:$0xff]
    %v145 = vld [vmem:[%s1 + $0x3c0] sm:$0xff]
    %v146 = vld [vmem:[%s1 + $0x3c8] sm:$0xff]
    %v147 = vld [vmem:[%s1 + $0x3d0] sm:$0xff]
    %v148 = vld [vmem:[%s1 + $0x3d8] sm:$0xff]
    %v149 = vld [vmem:[%s1 + $0x3e0] sm:$0xff]
    %v150 = vld [vmem:[%s1 + $0x3e8] sm:$0xff]
    %v151 = vld [vmem:[%s1 + $0x3f0] sm:$0xff]
    %v152 = vld [vmem:[%s1 + $0x3f8] sm:$0xff]
    %v153 = vld [vmem:[%s1 + $0x400] sm:$0xff]
    %v154 = vld [vmem:[%s1 + $0x408] sm:$0xff]
    %v155 = vld [vmem:[%s1 + $0x410] sm:$0xff]
    %v156 = vld [vmem:[%s1 + $0x418] sm:$0xff]
    %v157 = vld [vmem:[%s1 + $0x420] sm:$0xff]
    %v158 = vld [vmem:[%s1 + $0x428] sm:$0xff]
    %v159 = vld [vmem:[%s1 + $0x430] sm:$0xff]
    %v160 = vld [vmem:[%s1 + $0x438] sm:$0xff]
    %v161 = vld [vmem:[%s1 + $0x440] sm:$0xff]
    %v162 = vld [vmem:[%s1 + $0x448] sm:$0xff]
    %v163 = vld [vmem:[%s1 + $0x450] sm:$0xff]
    %v164 = vld [vmem:[%s1 + $0x458] sm:$0xff]
    %v165 = vld [vmem:[%s1 + $0x460] sm:$0xff]
    %v166 = vld [vmem:[%s1 + $0x468] sm:$0xff]
    %v167 = vld [vmem:[%s1 + $0x470] sm:$0xff]
    %v168 = vld [vmem:[%s1 + $0x478] sm:$0xff]
    %v169 = vld [vmem:[%s1 + $0x480] sm:$0xff]
    %v170 = vld [vmem:[%s1 + $0x488] sm:$0xff]
    %v171 = vld [vmem:[%s1 + $0x490] sm:$0xff]
    %v172 = vld [vmem:[%s1 + $0x498] sm:$0xff]
    %v173 = vld [vmem:[%s1 + $0x4a0] sm:$0xff]
    %v174 = vld [vmem:[%s1 + $0x4a8] sm:$0xff]
    %v175 = vld [vmem:[%s1 + $0x4b0] sm:$0xff]
    %v176 = vld [vmem:[%s1 + $0x4b8] sm:$0xff]
    %v177 = vld [vmem:[%s1 + $0x4c0] sm:$0xff]
    %v178 = vld [vmem:[%s1 + $0x4c8] sm:$0xff]
    %v179 = vld [vmem:[%s1 + $0x4d0] sm:$0xff]
    %v180 = vld [vmem:[%s1 + $0x4d8] sm:$0xff]
    %v181 = vld [vmem:[%s1 + $0x4e0] sm:$0xff]
    %v182 = vld [vmem:[%s1 + $0x4e8] sm:$0xff]
    %v183 = vld [vmem:[%s1 + $0x4f0] sm:$0xff]
    %v184 = vld [vmem:[%s1 + $0x4f8] sm:$0xff]
    %v185 = vld [vmem:[%s1 + $0x500] sm:$0xff]
    %v186 = vld [vmem:[%s1 + $0x508] sm:$0xff]
    %v187 = vld [vmem:[%s1 + $0x510] sm:$0xff]
    %v188 = vld [vmem:[%s1 + $0x518] sm:$0xff]
    %v189 = vld [vmem:[%s1 + $0x520] sm:$0xff]
    %v190 = vld [vmem:[%s1 + $0x528] sm:$0xff]
    %v191 = vld [vmem:[%s1 + $0x530] sm:$0xff]
    %v192 = vld [vmem:[%s1 + $0x538] sm:$0xff]
    %v193 = vld [vmem:[%s1 + $0x540] sm:$0xff]
    %v194 = vld [vmem:[%s1 + $0x548] sm:$0xff]
    %v195 = vld [vmem:[%s1 + $0x550] sm:$0xff]
    %v196 = vld [vmem:[%s1 + $0x558] sm:$0xff]
    %v197 = vld [vmem:[%s1 + $0x560] sm:$0xff]
    %v198 = vld [vmem:[%s1 + $0x568] sm:$0xff]
    %v199 = vld [vmem:[%s1 + $0x570] sm:$0xff]
    %v200 = vld [vmem:[%s1 + $0x578] sm:$0xff]
    %v201 = vld [vmem:[%s1 + $0x580] sm:$0xff]
    %v202 = vld [vmem:[%s1 + $0x588] sm:$0xff]
    %v203 = vld [vmem:[%s1 + $0x590] sm:$0xff]
    %v204 = vld [vmem:[%s1 + $0x598] sm:$0xff]
    %v205 = vld [vmem:[%s1 + $0x5a0] sm:$0xff]
    %v206 = vld [vmem:[%s1 + $0x5a8] sm:$0xff]
    %v207 = vld [vmem:[%s1 + $0x5b0] sm:$0xff]
    %v208 = vld [vmem:[%s1 + $0x5b8] sm:$0xff]
    %v209 = vld [vmem:[%s1 + $0x5c0] sm:$0xff]
    %v210 = vld [vmem:[%s1 + $0x5c8] sm:$0xff]
    %v211 = vld [vmem:[%s1 + $0x5d0] sm:$0xff]
    %v212 = vld [vmem:[%s1 + $0x5d8] sm:$0xff]
    %v213 = vld [vmem:[%s1 + $0x5e0] sm:$0xff]
    %v214 = vld [vmem:[%s1 + $0x5e8] sm:$0xff]
    %v215 = vld [vmem:[%s1 + $0x5f0] sm:$0xff]
    %v216 = vld [vmem:[%s1 + $0x5f8] sm:$0xff]
    %v217 = vld [vmem:[%s1 + $0x600] sm:$0xff]
    %v218 = vld [vmem:[%s1 + $0x608] sm:$0xff]
    %v219 = vld [vmem:[%s1 + $0x610] sm:$0xff]
    %v220 = vld [vmem:[%s1 + $0x618] sm:$0xff]
    %v221 = vld [vmem:[%s1 + $0x620] sm:$0xff]
    %v222 = vld [vmem:[%s1 + $0x628] sm:$0xff]
    %v223 = vld [vmem:[%s1 + $0x630] sm:$0xff]
    %v224 = vld [vmem:[%s1 + $0x638] sm:$0xff]
    %v225 = vld [vmem:[%s1 + $0x640] sm:$0xff]
    %v226 = vld [vmem:[%s1 + $0x648] sm:$0xff]
    %v227 = vld [vmem:[%s1 + $0x650] sm:$0xff]
    %v228 = vld [vmem:[%s1 + $0x658] sm:$0xff]
    %v229 = vld [vmem:[%s1 + $0x660] sm:$0xff]
    %v230 = vld [vmem:[%s1 + $0x668] sm:$0xff]
    %v231 = vld [vmem:[%s1 + $0x670] sm:$0xff]
    %v232 = vld [vmem:[%s1 + $0x678] sm:$0xff]
    %v233 = vld [vmem:[%s1 + $0x680] sm:$0xff]
    %v234 = vld [vmem:[%s1 + $0x688] sm:$0xff]
    %v235 = vld [vmem:[%s1 + $0x690] sm:$0xff]
    %v236 = vld [vmem:[%s1 + $0x698] sm:$0xff]
    %v237 = vld [vmem:[%s1 + $0x6a0] sm:$0xff]
    %v238 = vld [vmem:[%s1 + $0x6a8] sm:$0xff]
    %v239 = vld [vmem:[%s1 + $0x6b0] sm:$0xff]
    %v240 = vld [vmem:[%s1 + $0x6b8] sm:$0xff]
    %v241 = vld [vmem:[%s1 + $0x6c0] sm:$0xff]
    %v242 = vld [vmem:[%s1 + $0x6c8] sm:$0xff]
    %v243 = vld [vmem:[%s1 + $0x6d0] sm:$0xff]
    %v244 = vld [vmem:[%s1 + $0x6d8] sm:$0xff]
    %v245 = vld [vmem:[%s1 + $0x6e0] sm:$0xff]
    %v246 = vld [vmem:[%s1 + $0x6e8] sm:$0xff]
    %v247 = vld [vmem:[%s1 + $0x6f0] sm:$0xff]
    %v248 = vld [vmem:[%s1 + $0x6f8] sm:$0xff]
    %v249 = vld [vmem:[%s2] sm:$0xf]
    %v251 = vperm.slane %v249, 0
    %v252 = vperm.slane %v249, 1
    %v253 = vperm.slane %v249, 2
    %v254 = vperm.slane %v249, 3
    %v263 = vunpack.c.l.b16 %v21
    %v264 = vunpack.c.h.b16 %v21
    %v265 = vunpack.c.l.b16 %v22
    %v266 = vunpack.c.h.b16 %v22
    %v267 = vunpack.c.l.b16 %v23
    %v268 = vunpack.c.h.b16 %v23
    %v269 = vunpack.c.l.b16 %v24
    %v270 = vpack.c.b16 %v263, %v263
    %v271 = vpack.c.b16 %v264, %v264
    %v272 = vpack.c.b16 %v265, %v265
    %v273 = vpack.c.b16 %v266, %v266
    %v274 = vpack.c.b16 %v267, %v267
    %v275 = vpack.c.b16 %v268, %v268
    %v276 = vpack.c.b16 %v269, %v269
    %v508 = vunpack.c.l.b16 %v25
    %v509 = vunpack.c.h.b16 %v25
    %v510 = vunpack.c.l.b16 %v26
    %v511 = vunpack.c.h.b16 %v26
    %v512 = vunpack.c.l.b16 %v27
    %v513 = vunpack.c.h.b16 %v27
    %v514 = vunpack.c.l.b16 %v28
    %v515 = vunpack.c.h.b16 %v28
    %v516 = vunpack.c.l.b16 %v29
    %v517 = vunpack.c.h.b16 %v29
    %v518 = vunpack.c.l.b16 %v30
    %v519 = vunpack.c.h.b16 %v30
    %v520 = vunpack.c.l.b16 %v31
    %v521 = vunpack.c.h.b16 %v31
    %v522 = vunpack.c.l.b16 %v32
    %v523 = vunpack.c.h.b16 %v32
    %v524 = vunpack.c.l.b16 %v33
    %v525 = vunpack.c.h.b16 %v33
    %v526 = vunpack.c.l.b16 %v34
    %v527 = vunpack.c.h.b16 %v34
    %v528 = vunpack.c.l.b16 %v35
    %v529 = vunpack.c.h.b16 %v35
    %v530 = vunpack.c.l.b16 %v36
    %v531 = vunpack.c.h.b16 %v36
    %v532 = vunpack.c.l.b16 %v37
    %v533 = vunpack.c.h.b16 %v37
    %v534 = vunpack.c.l.b16 %v38
    %v535 = vunpack.c.h.b16 %v38
    %v536 = vunpack.c.l.b16 %v39
    %v537 = vunpack.c.h.b16 %v39
    %v538 = vunpack.c.l.b16 %v40
    %v539 = vunpack.c.h.b16 %v40
    %v540 = vunpack.c.l.b16 %v41
    %v541 = vunpack.c.h.b16 %v41
    %v542 = vunpack.c.l.b16 %v42
    %v543 = vunpack.c.h.b16 %v42
    %v544 = vunpack.c.l.b16 %v43
    %v545 = vunpack.c.h.b16 %v43
    %v546 = vunpack.c.l.b16 %v44
    %v547 = vunpack.c.h.b16 %v44
    %v548 = vunpack.c.l.b16 %v45
    %v549 = vunpack.c.h.b16 %v45
    %v550 = vunpack.c.l.b16 %v46
    %v551 = vunpack.c.h.b16 %v46
    %v552 = vunpack.c.l.b16 %v47
    %v553 = vunpack.c.h.b16 %v47
    %v554 = vunpack.c.l.b16 %v48
    %v555 = vunpack.c.h.b16 %v48
    %v556 = vunpack.c.l.b16 %v49
    %v557 = vunpack.c.h.b16 %v49
    %v558 = vunpack.c.l.b16 %v50
    %v559 = vunpack.c.h.b16 %v50
    %v560 = vunpack.c.l.b16 %v51
    %v561 = vunpack.c.h.b16 %v51
    %v562 = vunpack.c.l.b16 %v52
    %v563 = vunpack.c.h.b16 %v52
    %v564 = vunpack.c.l.b16 %v53
    %v565 = vunpack.c.h.b16 %v53
    %v566 = vunpack.c.l.b16 %v54
    %v567 = vunpack.c.h.b16 %v54
    %v568 = vunpack.c.l.b16 %v55
    %v569 = vunpack.c.h.b16 %v55
    %v570 = vunpack.c.l.b16 %v56
    %v571 = vunpack.c.h.b16 %v56
    %v572 = vunpack.c.l.b16 %v57
    %v573 = vunpack.c.h.b16 %v57
    %v574 = vunpack.c.l.b16 %v58
    %v575 = vunpack.c.h.b16 %v58
    %v576 = vunpack.c.l.b16 %v59
    %v577 = vunpack.c.h.b16 %v59
    %v578 = vunpack.c.l.b16 %v60
    %v579 = vunpack.c.h.b16 %v60
    %v580 = vunpack.c.l.b16 %v61
    %v581 = vunpack.c.h.b16 %v61
    %v582 = vunpack.c.l.b16 %v62
    %v583 = vunpack.c.h.b16 %v62
    %v584 = vunpack.c.l.b16 %v63
    %v585 = vunpack.c.h.b16 %v63
    %v586 = vunpack.c.l.b16 %v64
    %v587 = vunpack.c.h.b16 %v64
    %v588 = vunpack.c.l.b16 %v65
    %v589 = vunpack.c.h.b16 %v65
    %v590 = vunpack.c.l.b16 %v66
    %v591 = vunpack.c.h.b16 %v66
    %v592 = vunpack.c.l.b16 %v67
    %v593 = vunpack.c.h.b16 %v67
    %v594 = vunpack.c.l.b16 %v68
    %v595 = vunpack.c.h.b16 %v68
    %v596 = vunpack.c.l.b16 %v69
    %v597 = vunpack.c.h.b16 %v69
    %v598 = vunpack.c.l.b16 %v70
    %v599 = vunpack.c.h.b16 %v70
    %v600 = vunpack.c.l.b16 %v71
    %v601 = vunpack.c.h.b16 %v71
    %v602 = vunpack.c.l.b16 %v72
    %v603 = vunpack.c.h.b16 %v72
    %v604 = vunpack.c.l.b16 %v73
    %v605 = vunpack.c.h.b16 %v73
    %v606 = vunpack.c.l.b16 %v74
    %v607 = vunpack.c.h.b16 %v74
    %v608 = vunpack.c.l.b16 %v75
    %v609 = vunpack.c.h.b16 %v75
    %v610 = vunpack.c.l.b16 %v76
    %v611 = vunpack.c.h.b16 %v76
    %v612 = vunpack.c.l.b16 %v77
    %v613 = vunpack.c.h.b16 %v77
    %v614 = vunpack.c.l.b16 %v78
    %v615 = vunpack.c.h.b16 %v78
    %v616 = vunpack.c.l.b16 %v79
    %v617 = vunpack.c.h.b16 %v79
    %v618 = vunpack.c.l.b16 %v80
    %v619 = vunpack.c.h.b16 %v80
    %v620 = vunpack.c.l.b16 %v81
    %v621 = vunpack.c.h.b16 %v81
    %v622 = vunpack.c.l.b16 %v82
    %v623 = vunpack.c.h.b16 %v82
    %v624 = vunpack.c.l.b16 %v83
    %v625 = vunpack.c.h.b16 %v83
    %v626 = vunpack.c.l.b16 %v84
    %v627 = vunpack.c.h.b16 %v84
    %v628 = vunpack.c.l.b16 %v85
    %v629 = vunpack.c.h.b16 %v85
    %v630 = vunpack.c.l.b16 %v86
    %v631 = vunpack.c.h.b16 %v86
    %v632 = vunpack.c.l.b16 %v87
    %v633 = vunpack.c.h.b16 %v87
    %v634 = vunpack.c.l.b16 %v88
    %v635 = vunpack.c.h.b16 %v88
    %v636 = vunpack.c.l.b16 %v89
    %v637 = vunpack.c.h.b16 %v89
    %v638 = vunpack.c.l.b16 %v90
    %v639 = vunpack.c.h.b16 %v90
    %v640 = vunpack.c.l.b16 %v91
    %v641 = vunpack.c.h.b16 %v91
    %v642 = vunpack.c.l.b16 %v92
    %v643 = vunpack.c.h.b16 %v92
    %v644 = vunpack.c.l.b16 %v93
    %v645 = vunpack.c.h.b16 %v93
    %v646 = vunpack.c.l.b16 %v94
    %v647 = vunpack.c.h.b16 %v94
    %v648 = vunpack.c.l.b16 %v95
    %v649 = vunpack.c.h.b16 %v95
    %v650 = vunpack.c.l.b16 %v96
    %v651 = vunpack.c.h.b16 %v96
    %v652 = vunpack.c.l.b16 %v97
    %v653 = vunpack.c.h.b16 %v97
    %v654 = vunpack.c.l.b16 %v98
    %v655 = vunpack.c.h.b16 %v98
    %v656 = vunpack.c.l.b16 %v99
    %v657 = vunpack.c.h.b16 %v99
    %v658 = vunpack.c.l.b16 %v100
    %v659 = vunpack.c.h.b16 %v100
    %v660 = vunpack.c.l.b16 %v101
    %v661 = vunpack.c.h.b16 %v101
    %v662 = vunpack.c.l.b16 %v102
    %v663 = vunpack.c.h.b16 %v102
    %v664 = vunpack.c.l.b16 %v103
    %v665 = vunpack.c.h.b16 %v103
    %v666 = vunpack.c.l.b16 %v104
    %v667 = vunpack.c.h.b16 %v104
    %v668 = vunpack.c.l.b16 %v105
    %v669 = vunpack.c.h.b16 %v105
    %v670 = vunpack.c.l.b16 %v106
    %v671 = vunpack.c.h.b16 %v106
    %v672 = vunpack.c.l.b16 %v107
    %v673 = vunpack.c.h.b16 %v107
    %v674 = vunpack.c.l.b16 %v108
    %v675 = vunpack.c.h.b16 %v108
    %v676 = vunpack.c.l.b16 %v109
    %v677 = vunpack.c.h.b16 %v109
    %v678 = vunpack.c.l.b16 %v110
    %v679 = vunpack.c.h.b16 %v110
    %v680 = vunpack.c.l.b16 %v111
    %v681 = vunpack.c.h.b16 %v111
    %v682 = vunpack.c.l.b16 %v112
    %v683 = vunpack.c.h.b16 %v112
    %v684 = vunpack.c.l.b16 %v113
    %v685 = vunpack.c.h.b16 %v113
    %v686 = vunpack.c.l.b16 %v114
    %v687 = vunpack.c.h.b16 %v114
    %v688 = vunpack.c.l.b16 %v115
    %v689 = vunpack.c.h.b16 %v115
    %v690 = vunpack.c.l.b16 %v116
    %v691 = vunpack.c.h.b16 %v116
    %v692 = vunpack.c.l.b16 %v117
    %v693 = vunpack.c.h.b16 %v117
    %v694 = vunpack.c.l.b16 %v118
    %v695 = vunpack.c.h.b16 %v118
    %v696 = vunpack.c.l.b16 %v119
    %v697 = vunpack.c.h.b16 %v119
    %v698 = vunpack.c.l.b16 %v120
    %v699 = vunpack.c.h.b16 %v120
    %v700 = vunpack.c.l.b16 %v121
    %v701 = vunpack.c.h.b16 %v121
    %v702 = vunpack.c.l.b16 %v122
    %v703 = vunpack.c.h.b16 %v122
    %v704 = vunpack.c.l.b16 %v123
    %v705 = vunpack.c.h.b16 %v123
    %v706 = vunpack.c.l.b16 %v124
    %v707 = vunpack.c.h.b16 %v124
    %v708 = vunpack.c.l.b16 %v125
    %v709 = vunpack.c.h.b16 %v125
    %v710 = vunpack.c.l.b16 %v126
    %v711 = vunpack.c.h.b16 %v126
    %v712 = vunpack.c.l.b16 %v127
    %v713 = vunpack.c.h.b16 %v127
    %v714 = vunpack.c.l.b16 %v128
    %v715 = vunpack.c.h.b16 %v128
    %v716 = vunpack.c.l.b16 %v129
    %v717 = vunpack.c.h.b16 %v129
    %v718 = vunpack.c.l.b16 %v130
    %v719 = vunpack.c.h.b16 %v130
    %v720 = vunpack.c.l.b16 %v131
    %v721 = vunpack.c.h.b16 %v131
    %v722 = vunpack.c.l.b16 %v132
    %v723 = vunpack.c.h.b16 %v132
    %v724 = vunpack.c.l.b16 %v133
    %v725 = vunpack.c.h.b16 %v133
    %v726 = vunpack.c.l.b16 %v134
    %v727 = vunpack.c.h.b16 %v134
    %v728 = vunpack.c.l.b16 %v135
    %v729 = vunpack.c.h.b16 %v135
    %v730 = vunpack.c.l.b16 %v136
    %v731 = vunpack.c.h.b16 %v136
    %v732 = vunpack.c.l.b16 %v137
    %v733 = vunpack.c.h.b16 %v137
    %v734 = vunpack.c.l.b16 %v138
    %v735 = vunpack.c.h.b16 %v138
    %v736 = vunpack.c.l.b16 %v139
    %v737 = vunpack.c.h.b16 %v139
    %v738 = vunpack.c.l.b16 %v140
    %v739 = vunpack.c.h.b16 %v140
    %v740 = vunpack.c.l.b16 %v141
    %v741 = vunpack.c.h.b16 %v141
    %v742 = vunpack.c.l.b16 %v142
    %v743 = vunpack.c.h.b16 %v142
    %v744 = vunpack.c.l.b16 %v143
    %v745 = vunpack.c.h.b16 %v143
    %v746 = vunpack.c.l.b16 %v144
    %v747 = vunpack.c.h.b16 %v144
    %v748 = vunpack.c.l.b16 %v145
    %v749 = vunpack.c.h.b16 %v145
    %v750 = vunpack.c.l.b16 %v146
    %v751 = vunpack.c.h.b16 %v146
    %v752 = vunpack.c.l.b16 %v147
    %v753 = vunpack.c.h.b16 %v147
    %v754 = vunpack.c.l.b16 %v148
    %v755 = vunpack.c.h.b16 %v148
    %v756 = vunpack.c.l.b16 %v149
    %v757 = vunpack.c.h.b16 %v149
    %v758 = vunpack.c.l.b16 %v150
    %v759 = vunpack.c.h.b16 %v150
    %v760 = vunpack.c.l.b16 %v151
    %v761 = vunpack.c.h.b16 %v151
    %v762 = vunpack.c.l.b16 %v152
    %v763 = vunpack.c.h.b16 %v152
    %v764 = vunpack.c.l.b16 %v153
    %v765 = vunpack.c.h.b16 %v153
    %v766 = vunpack.c.l.b16 %v154
    %v767 = vunpack.c.h.b16 %v154
    %v768 = vunpack.c.l.b16 %v155
    %v769 = vunpack.c.h.b16 %v155
    %v770 = vunpack.c.l.b16 %v156
    %v771 = vunpack.c.h.b16 %v156
    %v772 = vunpack.c.l.b16 %v157
    %v773 = vunpack.c.h.b16 %v157
    %v774 = vunpack.c.l.b16 %v158
    %v775 = vunpack.c.h.b16 %v158
    %v776 = vunpack.c.l.b16 %v159
    %v777 = vunpack.c.h.b16 %v159
    %v778 = vunpack.c.l.b16 %v160
    %v779 = vunpack.c.h.b16 %v160
    %v780 = vunpack.c.l.b16 %v161
    %v781 = vunpack.c.h.b16 %v161
    %v782 = vunpack.c.l.b16 %v162
    %v783 = vunpack.c.h.b16 %v162
    %v784 = vunpack.c.l.b16 %v163
    %v785 = vunpack.c.h.b16 %v163
    %v786 = vunpack.c.l.b16 %v164
    %v787 = vunpack.c.h.b16 %v164
    %v788 = vunpack.c.l.b16 %v165
    %v789 = vunpack.c.h.b16 %v165
    %v790 = vunpack.c.l.b16 %v166
    %v791 = vunpack.c.h.b16 %v166
    %v792 = vunpack.c.l.b16 %v167
    %v793 = vunpack.c.h.b16 %v167
    %v794 = vunpack.c.l.b16 %v168
    %v795 = vunpack.c.h.b16 %v168
    %v796 = vunpack.c.l.b16 %v169
    %v797 = vunpack.c.h.b16 %v169
    %v798 = vunpack.c.l.b16 %v170
    %v799 = vunpack.c.h.b16 %v170
    %v800 = vunpack.c.l.b16 %v171
    %v801 = vunpack.c.h.b16 %v171
    %v802 = vunpack.c.l.b16 %v172
    %v803 = vunpack.c.h.b16 %v172
    %v804 = vunpack.c.l.b16 %v173
    %v805 = vunpack.c.h.b16 %v173
    %v806 = vunpack.c.l.b16 %v174
    %v807 = vunpack.c.h.b16 %v174
    %v808 = vunpack.c.l.b16 %v175
    %v809 = vunpack.c.h.b16 %v175
    %v810 = vunpack.c.l.b16 %v176
    %v811 = vunpack.c.h.b16 %v176
    %v812 = vunpack.c.l.b16 %v177
    %v813 = vunpack.c.h.b16 %v177
    %v814 = vunpack.c.l.b16 %v178
    %v815 = vunpack.c.h.b16 %v178
    %v816 = vunpack.c.l.b16 %v179
    %v817 = vunpack.c.h.b16 %v179
    %v818 = vunpack.c.l.b16 %v180
    %v819 = vunpack.c.h.b16 %v180
    %v820 = vunpack.c.l.b16 %v181
    %v821 = vunpack.c.h.b16 %v181
    %v822 = vunpack.c.l.b16 %v182
    %v823 = vunpack.c.h.b16 %v182
    %v824 = vunpack.c.l.b16 %v183
    %v825 = vunpack.c.h.b16 %v183
    %v826 = vunpack.c.l.b16 %v184
    %v827 = vunpack.c.h.b16 %v184
    %v828 = vunpack.c.l.b16 %v185
    %v829 = vunpack.c.h.b16 %v185
    %v830 = vunpack.c.l.b16 %v186
    %v831 = vunpack.c.h.b16 %v186
    %v832 = vunpack.c.l.b16 %v187
    %v833 = vunpack.c.h.b16 %v187
    %v834 = vunpack.c.l.b16 %v188
    %v835 = vunpack.c.h.b16 %v188
    %v836 = vunpack.c.l.b16 %v189
    %v837 = vunpack.c.h.b16 %v189
    %v838 = vunpack.c.l.b16 %v190
    %v839 = vunpack.c.h.b16 %v190
    %v840 = vunpack.c.l.b16 %v191
    %v841 = vunpack.c.h.b16 %v191
    %v842 = vunpack.c.l.b16 %v192
    %v843 = vunpack.c.h.b16 %v192
    %v844 = vunpack.c.l.b16 %v193
    %v845 = vunpack.c.h.b16 %v193
    %v846 = vunpack.c.l.b16 %v194
    %v847 = vunpack.c.h.b16 %v194
    %v848 = vunpack.c.l.b16 %v195
    %v849 = vunpack.c.h.b16 %v195
    %v850 = vunpack.c.l.b16 %v196
    %v851 = vunpack.c.h.b16 %v196
    %v852 = vunpack.c.l.b16 %v197
    %v853 = vunpack.c.h.b16 %v197
    %v854 = vunpack.c.l.b16 %v198
    %v855 = vunpack.c.h.b16 %v198
    %v856 = vunpack.c.l.b16 %v199
    %v857 = vunpack.c.h.b16 %v199
    %v858 = vunpack.c.l.b16 %v200
    %v859 = vunpack.c.h.b16 %v200
    %v860 = vunpack.c.l.b16 %v201
    %v861 = vunpack.c.h.b16 %v201
    %v862 = vunpack.c.l.b16 %v202
    %v863 = vunpack.c.h.b16 %v202
    %v864 = vunpack.c.l.b16 %v203
    %v865 = vunpack.c.h.b16 %v203
    %v866 = vunpack.c.l.b16 %v204
    %v867 = vunpack.c.h.b16 %v204
    %v868 = vunpack.c.l.b16 %v205
    %v869 = vunpack.c.h.b16 %v205
    %v870 = vunpack.c.l.b16 %v206
    %v871 = vunpack.c.h.b16 %v206
    %v872 = vunpack.c.l.b16 %v207
    %v873 = vunpack.c.h.b16 %v207
    %v874 = vunpack.c.l.b16 %v208
    %v875 = vunpack.c.h.b16 %v208
    %v876 = vunpack.c.l.b16 %v209
    %v877 = vunpack.c.h.b16 %v209
    %v878 = vunpack.c.l.b16 %v210
    %v879 = vunpack.c.h.b16 %v210
    %v880 = vunpack.c.l.b16 %v211
    %v881 = vunpack.c.h.b16 %v211
    %v882 = vunpack.c.l.b16 %v212
    %v883 = vunpack.c.h.b16 %v212
    %v884 = vunpack.c.l.b16 %v213
    %v885 = vunpack.c.h.b16 %v213
    %v886 = vunpack.c.l.b16 %v214
    %v887 = vunpack.c.h.b16 %v214
    %v888 = vunpack.c.l.b16 %v215
    %v889 = vunpack.c.h.b16 %v215
    %v890 = vunpack.c.l.b16 %v216
    %v891 = vunpack.c.h.b16 %v216
    %v892 = vunpack.c.l.b16 %v217
    %v893 = vunpack.c.h.b16 %v217
    %v894 = vunpack.c.l.b16 %v218
    %v895 = vunpack.c.h.b16 %v218
    %v896 = vunpack.c.l.b16 %v219
    %v897 = vunpack.c.h.b16 %v219
    %v898 = vunpack.c.l.b16 %v220
    %v899 = vunpack.c.h.b16 %v220
    %v900 = vunpack.c.l.b16 %v221
    %v901 = vunpack.c.h.b16 %v221
    %v902 = vunpack.c.l.b16 %v222
    %v903 = vunpack.c.h.b16 %v222
    %v904 = vunpack.c.l.b16 %v223
    %v905 = vunpack.c.h.b16 %v223
    %v906 = vunpack.c.l.b16 %v224
    %v907 = vunpack.c.h.b16 %v224
    %v908 = vunpack.c.l.b16 %v225
    %v909 = vunpack.c.h.b16 %v225
    %v910 = vunpack.c.l.b16 %v226
    %v911 = vunpack.c.h.b16 %v226
    %v912 = vunpack.c.l.b16 %v227
    %v913 = vunpack.c.h.b16 %v227
    %v914 = vunpack.c.l.b16 %v228
    %v915 = vunpack.c.h.b16 %v228
    %v916 = vunpack.c.l.b16 %v229
    %v917 = vunpack.c.h.b16 %v229
    %v918 = vunpack.c.l.b16 %v230
    %v919 = vunpack.c.h.b16 %v230
    %v920 = vunpack.c.l.b16 %v231
    %v921 = vunpack.c.h.b16 %v231
    %v922 = vunpack.c.l.b16 %v232
    %v923 = vunpack.c.h.b16 %v232
    %v924 = vunpack.c.l.b16 %v233
    %v925 = vunpack.c.h.b16 %v233
    %v926 = vunpack.c.l.b16 %v234
    %v927 = vunpack.c.h.b16 %v234
    %v928 = vunpack.c.l.b16 %v235
    %v929 = vunpack.c.h.b16 %v235
    %v930 = vunpack.c.l.b16 %v236
    %v931 = vunpack.c.h.b16 %v236
    %v932 = vunpack.c.l.b16 %v237
    %v933 = vunpack.c.h.b16 %v237
    %v934 = vunpack.c.l.b16 %v238
    %v935 = vunpack.c.h.b16 %v238
    %v936 = vunpack.c.l.b16 %v239
    %v937 = vunpack.c.h.b16 %v239
    %v938 = vunpack.c.l.b16 %v240
    %v939 = vunpack.c.h.b16 %v240
    %v940 = vunpack.c.l.b16 %v241
    %v941 = vunpack.c.h.b16 %v241
    %v942 = vunpack.c.l.b16 %v242
    %v943 = vunpack.c.h.b16 %v242
    %v944 = vunpack.c.l.b16 %v243
    %v945 = vunpack.c.h.b16 %v243
    %v946 = vunpack.c.l.b16 %v244
    %v947 = vunpack.c.h.b16 %v244
    %v948 = vunpack.c.l.b16 %v245
    %v949 = vunpack.c.h.b16 %v245
    %v950 = vunpack.c.l.b16 %v246
    %v951 = vunpack.c.h.b16 %v246
    %v952 = vunpack.c.l.b16 %v247
    %v953 = vunpack.c.h.b16 %v247
    %v954 = vunpack.c.l.b16 %v248
    %v955 = vunpack.c.h.b16 %v248
    %v956 = vpack.c.b16 %v512, %v508
    %v957 = vpack.c.b16 %v513, %v509
    %v958 = vpack.c.b16 %v514, %v510
    %v959 = vpack.c.b16 %v515, %v511
    %v960 = vpack.c.b16 %v520, %v516
    %v961 = vpack.c.b16 %v521, %v517
    %v962 = vpack.c.b16 %v522, %v518
    %v963 = vpack.c.b16 %v523, %v519
    %v964 = vpack.c.b16 %v528, %v524
    %v965 = vpack.c.b16 %v529, %v525
    %v966 = vpack.c.b16 %v530, %v526
    %v967 = vpack.c.b16 %v531, %v527
    %v968 = vpack.c.b16 %v536, %v532
    %v969 = vpack.c.b16 %v537, %v533
    %v970 = vpack.c.b16 %v538, %v534
    %v971 = vpack.c.b16 %v539, %v535
    %v972 = vpack.c.b16 %v544, %v540
    %v973 = vpack.c.b16 %v545, %v541
    %v974 = vpack.c.b16 %v546, %v542
    %v975 = vpack.c.b16 %v547, %v543
    %v976 = vpack.c.b16 %v552, %v548
    %v977 = vpack.c.b16 %v553, %v549
    %v978 = vpack.c.b16 %v554, %v550
    %v979 = vpack.c.b16 %v555, %v551
    %v980 = vpack.c.b16 %v560, %v556
    %v981 = vpack.c.b16 %v561, %v557
    %v982 = vpack.c.b16 %v562, %v558
    %v983 = vpack.c.b16 %v563, %v559
    %v984 = vpack.c.b16 %v568, %v564
    %v985 = vpack.c.b16 %v569, %v565
    %v986 = vpack.c.b16 %v570, %v566
    %v987 = vpack.c.b16 %v571, %v567
    %v988 = vpack.c.b16 %v576, %v572
    %v989 = vpack.c.b16 %v577, %v573
    %v990 = vpack.c.b16 %v578, %v574
    %v991 = vpack.c.b16 %v579, %v575
    %v992 = vpack.c.b16 %v584, %v580
    %v993 = vpack.c.b16 %v585, %v581
    %v994 = vpack.c.b16 %v586, %v582
    %v995 = vpack.c.b16 %v587, %v583
    %v996 = vpack.c.b16 %v592, %v588
    %v997 = vpack.c.b16 %v593, %v589
    %v998 = vpack.c.b16 %v594, %v590
    %v999 = vpack.c.b16 %v595, %v591
    %v1000 = vpack.c.b16 %v600, %v596
    %v1001 = vpack.c.b16 %v601, %v597
    %v1002 = vpack.c.b16 %v602, %v598
    %v1003 = vpack.c.b16 %v603, %v599
    %v1004 = vpack.c.b16 %v608, %v604
    %v1005 = vpack.c.b16 %v609, %v605
    %v1006 = vpack.c.b16 %v610, %v606
    %v1007 = vpack.c.b16 %v611, %v607
    %v1008 = vpack.c.b16 %v616, %v612
    %v1009 = vpack.c.b16 %v617, %v613
    %v1010 = vpack.c.b16 %v618, %v614
    %v1011 = vpack.c.b16 %v619, %v615
    %v1012 = vpack.c.b16 %v624, %v620
    %v1013 = vpack.c.b16 %v625, %v621
    %v1014 = vpack.c.b16 %v626, %v622
    %v1015 = vpack.c.b16 %v627, %v623
    %v1016 = vpack.c.b16 %v632, %v628
    %v1017 = vpack.c.b16 %v633, %v629
    %v1018 = vpack.c.b16 %v634, %v630
    %v1019 = vpack.c.b16 %v635, %v631
    %v1020 = vpack.c.b16 %v640, %v636
    %v1021 = vpack.c.b16 %v641, %v637
    %v1022 = vpack.c.b16 %v642, %v638
    %v1023 = vpack.c.b16 %v643, %v639
    %v1024 = vpack.c.b16 %v648, %v644
    %v1025 = vpack.c.b16 %v649, %v645
    %v1026 = vpack.c.b16 %v650, %v646
    %v1027 = vpack.c.b16 %v651, %v647
    %v1028 = vpack.c.b16 %v656, %v652
    %v1029 = vpack.c.b16 %v657, %v653
    %v1030 = vpack.c.b16 %v658, %v654
    %v1031 = vpack.c.b16 %v659, %v655
    %v1032 = vpack.c.b16 %v664, %v660
    %v1033 = vpack.c.b16 %v665, %v661
    %v1034 = vpack.c.b16 %v666, %v662
    %v1035 = vpack.c.b16 %v667, %v663
    %v1036 = vpack.c.b16 %v672, %v668
    %v1037 = vpack.c.b16 %v673, %v669
    %v1038 = vpack.c.b16 %v674, %v670
    %v1039 = vpack.c.b16 %v675, %v671
    %v1040 = vpack.c.b16 %v680, %v676
    %v1041 = vpack.c.b16 %v681, %v677
    %v1042 = vpack.c.b16 %v682, %v678
    %v1043 = vpack.c.b16 %v683, %v679
    %v1044 = vpack.c.b16 %v688, %v684
    %v1045 = vpack.c.b16 %v689, %v685
    %v1046 = vpack.c.b16 %v690, %v686
    %v1047 = vpack.c.b16 %v691, %v687
    %v1048 = vpack.c.b16 %v696, %v692
    %v1049 = vpack.c.b16 %v697, %v693
    %v1050 = vpack.c.b16 %v698, %v694
    %v1051 = vpack.c.b16 %v699, %v695
    %v1052 = vpack.c.b16 %v704, %v700
    %v1053 = vpack.c.b16 %v705, %v701
    %v1054 = vpack.c.b16 %v706, %v702
    %v1055 = vpack.c.b16 %v707, %v703
    %v1056 = vpack.c.b16 %v712, %v708
    %v1057 = vpack.c.b16 %v713, %v709
    %v1058 = vpack.c.b16 %v714, %v710
    %v1059 = vpack.c.b16 %v715, %v711
    %v1060 = vpack.c.b16 %v720, %v716
    %v1061 = vpack.c.b16 %v721, %v717
    %v1062 = vpack.c.b16 %v722, %v718
    %v1063 = vpack.c.b16 %v723, %v719
    %v1064 = vpack.c.b16 %v728, %v724
    %v1065 = vpack.c.b16 %v729, %v725
    %v1066 = vpack.c.b16 %v730, %v726
    %v1067 = vpack.c.b16 %v731, %v727
    %v1068 = vpack.c.b16 %v736, %v732
    %v1069 = vpack.c.b16 %v737, %v733
    %v1070 = vpack.c.b16 %v738, %v734
    %v1071 = vpack.c.b16 %v739, %v735
    %v1072 = vpack.c.b16 %v744, %v740
    %v1073 = vpack.c.b16 %v745, %v741
    %v1074 = vpack.c.b16 %v746, %v742
    %v1075 = vpack.c.b16 %v747, %v743
    %v1076 = vpack.c.b16 %v752, %v748
    %v1077 = vpack.c.b16 %v753, %v749
    %v1078 = vpack.c.b16 %v754, %v750
    %v1079 = vpack.c.b16 %v755, %v751
    %v1080 = vpack.c.b16 %v760, %v756
    %v1081 = vpack.c.b16 %v761, %v757
    %v1082 = vpack.c.b16 %v762, %v758
    %v1083 = vpack.c.b16 %v763, %v759
    %v1084 = vpack.c.b16 %v768, %v764
    %v1085 = vpack.c.b16 %v769, %v765
    %v1086 = vpack.c.b16 %v770, %v766
    %v1087 = vpack.c.b16 %v771, %v767
    %v1088 = vpack.c.b16 %v776, %v772
    %v1089 = vpack.c.b16 %v777, %v773
    %v1090 = vpack.c.b16 %v778, %v774
    %v1091 = vpack.c.b16 %v779, %v775
    %v1092 = vpack.c.b16 %v784, %v780
    %v1093 = vpack.c.b16 %v785, %v781
    %v1094 = vpack.c.b16 %v786, %v782
    %v1095 = vpack.c.b16 %v787, %v783
    %v1096 = vpack.c.b16 %v792, %v788
    %v1097 = vpack.c.b16 %v793, %v789
    %v1098 = vpack.c.b16 %v794, %v790
    %v1099 = vpack.c.b16 %v795, %v791
    %v1100 = vpack.c.b16 %v800, %v796
    %v1101 = vpack.c.b16 %v801, %v797
    %v1102 = vpack.c.b16 %v802, %v798
    %v1103 = vpack.c.b16 %v803, %v799
    %v1104 = vpack.c.b16 %v808, %v804
    %v1105 = vpack.c.b16 %v809, %v805
    %v1106 = vpack.c.b16 %v810, %v806
    %v1107 = vpack.c.b16 %v811, %v807
    %v1108 = vpack.c.b16 %v816, %v812
    %v1109 = vpack.c.b16 %v817, %v813
    %v1110 = vpack.c.b16 %v818, %v814
    %v1111 = vpack.c.b16 %v819, %v815
    %v1112 = vpack.c.b16 %v824, %v820
    %v1113 = vpack.c.b16 %v825, %v821
    %v1114 = vpack.c.b16 %v826, %v822
    %v1115 = vpack.c.b16 %v827, %v823
    %v1116 = vpack.c.b16 %v832, %v828
    %v1117 = vpack.c.b16 %v833, %v829
    %v1118 = vpack.c.b16 %v834, %v830
    %v1119 = vpack.c.b16 %v835, %v831
    %v1120 = vpack.c.b16 %v840, %v836
    %v1121 = vpack.c.b16 %v841, %v837
    %v1122 = vpack.c.b16 %v842, %v838
    %v1123 = vpack.c.b16 %v843, %v839
    %v1124 = vpack.c.b16 %v848, %v844
    %v1125 = vpack.c.b16 %v849, %v845
    %v1126 = vpack.c.b16 %v850, %v846
    %v1127 = vpack.c.b16 %v851, %v847
    %v1128 = vpack.c.b16 %v856, %v852
    %v1129 = vpack.c.b16 %v857, %v853
    %v1130 = vpack.c.b16 %v858, %v854
    %v1131 = vpack.c.b16 %v859, %v855
    %v1132 = vpack.c.b16 %v864, %v860
    %v1133 = vpack.c.b16 %v865, %v861
    %v1134 = vpack.c.b16 %v866, %v862
    %v1135 = vpack.c.b16 %v867, %v863
    %v1136 = vpack.c.b16 %v872, %v868
    %v1137 = vpack.c.b16 %v873, %v869
    %v1138 = vpack.c.b16 %v874, %v870
    %v1139 = vpack.c.b16 %v875, %v871
    %v1140 = vpack.c.b16 %v880, %v876
    %v1141 = vpack.c.b16 %v881, %v877
    %v1142 = vpack.c.b16 %v882, %v878
    %v1143 = vpack.c.b16 %v883, %v879
    %v1144 = vpack.c.b16 %v888, %v884
    %v1145 = vpack.c.b16 %v889, %v885
    %v1146 = vpack.c.b16 %v890, %v886
    %v1147 = vpack.c.b16 %v891, %v887
    %v1148 = vpack.c.b16 %v896, %v892
    %v1149 = vpack.c.b16 %v897, %v893
    %v1150 = vpack.c.b16 %v898, %v894
    %v1151 = vpack.c.b16 %v899, %v895
    %v1152 = vpack.c.b16 %v904, %v900
    %v1153 = vpack.c.b16 %v905, %v901
    %v1154 = vpack.c.b16 %v906, %v902
    %v1155 = vpack.c.b16 %v907, %v903
    %v1156 = vpack.c.b16 %v912, %v908
    %v1157 = vpack.c.b16 %v913, %v909
    %v1158 = vpack.c.b16 %v914, %v910
    %v1159 = vpack.c.b16 %v915, %v911
    %v1160 = vpack.c.b16 %v920, %v916
    %v1161 = vpack.c.b16 %v921, %v917
    %v1162 = vpack.c.b16 %v922, %v918
    %v1163 = vpack.c.b16 %v923, %v919
    %v1164 = vpack.c.b16 %v928, %v924
    %v1165 = vpack.c.b16 %v929, %v925
    %v1166 = vpack.c.b16 %v930, %v926
    %v1167 = vpack.c.b16 %v931, %v927
    %v1168 = vpack.c.b16 %v936, %v932
    %v1169 = vpack.c.b16 %v937, %v933
    %v1170 = vpack.c.b16 %v938, %v934
    %v1171 = vpack.c.b16 %v939, %v935
    %v1172 = vpack.c.b16 %v944, %v940
    %v1173 = vpack.c.b16 %v945, %v941
    %v1174 = vpack.c.b16 %v946, %v942
    %v1175 = vpack.c.b16 %v947, %v943
    %v1176 = vpack.c.b16 %v952, %v948
    %v1177 = vpack.c.b16 %v953, %v949
    %v1178 = vpack.c.b16 %v954, %v950
    %v1179 = vpack.c.b16 %v955, %v951
    %1404 = vmatpush.bf16.msra.mxu0 %v984
    %1405 = vmatpush.bf16.msra.mxu0 %v980
    %1406 = vmatpush.bf16.msra.mxu0 %v976
    %1407 = vmatpush.bf16.msra.mxu0 %v972
    %1408 = vmatpush.bf16.msra.mxu0 %v968
    %1409 = vmatpush.bf16.msra.mxu0 %v964
    %1410 = vmatpush.bf16.msra.mxu0 %v960
    %1411 = vmatpush.bf16.msra.mxu0 %v956
    %1412 = vmatmul.bf16.gmra.mxu0 %v270
    %v1413 = vpop.f32.mrf.mxu0
    %v1414 = vadd.f32 %v251, %v1413
    %v1415 = vpop.f32.mrf.mxu0
    %1416 = vdwg.mxu0
    %1417 = vmatpush.bf16.msra.mxu0 %v1016
    %1418 = vmatpush.bf16.msra.mxu0 %v1012
    %1419 = vmatpush.bf16.msra.mxu0 %v1008
    %1420 = vmatpush.bf16.msra.mxu0 %v1004
    %1421 = vmatpush.bf16.msra.mxu0 %v1000
    %1422 = vmatpush.bf16.msra.mxu0 %v996
    %1423 = vmatpush.bf16.msra.mxu0 %v992
    %1424 = vmatpush.bf16.msra.mxu0 %v988
    %1425 = vmatmul.bf16.gmra.mxu0 %v271
    %v1426 = vpop.f32.mrf.mxu0
    %v1427 = vadd.f32 %v1414, %v1426
    %v1428 = vpop.f32.mrf.mxu0
    %1429 = vdwg.mxu0
    %1430 = vmatpush.bf16.msra.mxu0 %v1048
    %1431 = vmatpush.bf16.msra.mxu0 %v1044
    %1432 = vmatpush.bf16.msra.mxu0 %v1040
    %1433 = vmatpush.bf16.msra.mxu0 %v1036
    %1434 = vmatpush.bf16.msra.mxu0 %v1032
    %1435 = vmatpush.bf16.msra.mxu0 %v1028
    %1436 = vmatpush.bf16.msra.mxu0 %v1024
    %1437 = vmatpush.bf16.msra.mxu0 %v1020
    %1438 = vmatmul.bf16.gmra.mxu0 %v272
    %v1439 = vpop.f32.mrf.mxu0
    %v1440 = vadd.f32 %v1427, %v1439
    %v1441 = vpop.f32.mrf.mxu0
    %1442 = vdwg.mxu0
    %1443 = vmatpush.bf16.msra.mxu0 %v1080
    %1444 = vmatpush.bf16.msra.mxu0 %v1076
    %1445 = vmatpush.bf16.msra.mxu0 %v1072
    %1446 = vmatpush.bf16.msra.mxu0 %v1068
    %1447 = vmatpush.bf16.msra.mxu0 %v1064
    %1448 = vmatpush.bf16.msra.mxu0 %v1060
    %1449 = vmatpush.bf16.msra.mxu0 %v1056
    %1450 = vmatpush.bf16.msra.mxu0 %v1052
    %1451 = vmatmul.bf16.gmra.mxu0 %v273
    %v1452 = vpop.f32.mrf.mxu0
    %v1453 = vadd.f32 %v1440, %v1452
    %v1454 = vpop.f32.mrf.mxu0
    %1455 = vdwg.mxu0
    %1456 = vmatpush.bf16.msra.mxu0 %v1112
    %1457 = vmatpush.bf16.msra.mxu0 %v1108
    %1458 = vmatpush.bf16.msra.mxu0 %v1104
    %1459 = vmatpush.bf16.msra.mxu0 %v1100
    %1460 = vmatpush.bf16.msra.mxu0 %v1096
    %1461 = vmatpush.bf16.msra.mxu0 %v1092
    %1462 = vmatpush.bf16.msra.mxu0 %v1088
    %1463 = vmatpush.bf16.msra.mxu0 %v1084
    %1464 = vmatmul.bf16.gmra.mxu0 %v274
    %v1465 = vpop.f32.mrf.mxu0
    %v1466 = vadd.f32 %v1453, %v1465
    %v1467 = vpop.f32.mrf.mxu0
    %1468 = vdwg.mxu0
    %1469 = vmatpush.bf16.msra.mxu0 %v1144
    %1470 = vmatpush.bf16.msra.mxu0 %v1140
    %1471 = vmatpush.bf16.msra.mxu0 %v1136
    %1472 = vmatpush.bf16.msra.mxu0 %v1132
    %1473 = vmatpush.bf16.msra.mxu0 %v1128
    %1474 = vmatpush.bf16.msra.mxu0 %v1124
    %1475 = vmatpush.bf16.msra.mxu0 %v1120
    %1476 = vmatpush.bf16.msra.mxu0 %v1116
    %1477 = vmatmul.bf16.gmra.mxu0 %v275
    %v1478 = vpop.f32.mrf.mxu0
    %v1479 = vadd.f32 %v1466, %v1478
    %v1480 = vpop.f32.mrf.mxu0
    %1481 = vdwg.mxu0
    %1482 = vmatpush.bf16.msra.mxu0 %v1176
    %1483 = vmatpush.bf16.msra.mxu0 %v1172
    %1484 = vmatpush.bf16.msra.mxu0 %v1168
    %1485 = vmatpush.bf16.msra.mxu0 %v1164
    %1486 = vmatpush.bf16.msra.mxu0 %v1160
    %1487 = vmatpush.bf16.msra.mxu0 %v1156
    %1488 = vmatpush.bf16.msra.mxu0 %v1152
    %1489 = vmatpush.bf16.msra.mxu0 %v1148
    %1490 = vmatmul.bf16.gmra.mxu0 %v276
    %v1491 = vpop.f32.mrf.mxu0
    %v1492 = vadd.f32 %v1479, %v1491
    %v1493 = vpop.f32.mrf.mxu0
    %1494 = vdwg.mxu0
    %1495 = vmatpush.bf16.msra.mxu0 %v985
    %1496 = vmatpush.bf16.msra.mxu0 %v981
    %1497 = vmatpush.bf16.msra.mxu0 %v977
    %1498 = vmatpush.bf16.msra.mxu0 %v973
    %1499 = vmatpush.bf16.msra.mxu0 %v969
    %1500 = vmatpush.bf16.msra.mxu0 %v965
    %1501 = vmatpush.bf16.msra.mxu0 %v961
    %1502 = vmatpush.bf16.msra.mxu0 %v957
    %1503 = vmatmul.bf16.gmra.mxu0 %v270
    %v1504 = vpop.f32.mrf.mxu0
    %v1505 = vadd.f32 %v252, %v1504
    %v1506 = vpop.f32.mrf.mxu0
    %1507 = vdwg.mxu0
    %1508 = vmatpush.bf16.msra.mxu0 %v1017
    %1509 = vmatpush.bf16.msra.mxu0 %v1013
    %1510 = vmatpush.bf16.msra.mxu0 %v1009
    %1511 = vmatpush.bf16.msra.mxu0 %v1005
    %1512 = vmatpush.bf16.msra.mxu0 %v1001
    %1513 = vmatpush.bf16.msra.mxu0 %v997
    %1514 = vmatpush.bf16.msra.mxu0 %v993
    %1515 = vmatpush.bf16.msra.mxu0 %v989
    %1516 = vmatmul.bf16.gmra.mxu0 %v271
    %v1517 = vpop.f32.mrf.mxu0
    %v1518 = vadd.f32 %v1505, %v1517
    %v1519 = vpop.f32.mrf.mxu0
    %1520 = vdwg.mxu0
    %1521 = vmatpush.bf16.msra.mxu0 %v1049
    %1522 = vmatpush.bf16.msra.mxu0 %v1045
    %1523 = vmatpush.bf16.msra.mxu0 %v1041
    %1524 = vmatpush.bf16.msra.mxu0 %v1037
    %1525 = vmatpush.bf16.msra.mxu0 %v1033
    %1526 = vmatpush.bf16.msra.mxu0 %v1029
    %1527 = vmatpush.bf16.msra.mxu0 %v1025
    %1528 = vmatpush.bf16.msra.mxu0 %v1021
    %1529 = vmatmul.bf16.gmra.mxu0 %v272
    %v1530 = vpop.f32.mrf.mxu0
    %v1531 = vadd.f32 %v1518, %v1530
    %v1532 = vpop.f32.mrf.mxu0
    %1533 = vdwg.mxu0
    %1534 = vmatpush.bf16.msra.mxu0 %v1081
    %1535 = vmatpush.bf16.msra.mxu0 %v1077
    %1536 = vmatpush.bf16.msra.mxu0 %v1073
    %1537 = vmatpush.bf16.msra.mxu0 %v1069
    %1538 = vmatpush.bf16.msra.mxu0 %v1065
    %1539 = vmatpush.bf16.msra.mxu0 %v1061
    %1540 = vmatpush.bf16.msra.mxu0 %v1057
    %1541 = vmatpush.bf16.msra.mxu0 %v1053
    %1542 = vmatmul.bf16.gmra.mxu0 %v273
    %v1543 = vpop.f32.mrf.mxu0
    %v1544 = vadd.f32 %v1531, %v1543
    %v1545 = vpop.f32.mrf.mxu0
    %1546 = vdwg.mxu0
    %1547 = vmatpush.bf16.msra.mxu0 %v1113
    %1548 = vmatpush.bf16.msra.mxu0 %v1109
    %1549 = vmatpush.bf16.msra.mxu0 %v1105
    %1550 = vmatpush.bf16.msra.mxu0 %v1101
    %1551 = vmatpush.bf16.msra.mxu0 %v1097
    %1552 = vmatpush.bf16.msra.mxu0 %v1093
    %1553 = vmatpush.bf16.msra.mxu0 %v1089
    %1554 = vmatpush.bf16.msra.mxu0 %v1085
    %1555 = vmatmul.bf16.gmra.mxu0 %v274
    %v1556 = vpop.f32.mrf.mxu0
    %v1557 = vadd.f32 %v1544, %v1556
    %v1558 = vpop.f32.mrf.mxu0
    %1559 = vdwg.mxu0
    %1560 = vmatpush.bf16.msra.mxu0 %v1145
    %1561 = vmatpush.bf16.msra.mxu0 %v1141
    %1562 = vmatpush.bf16.msra.mxu0 %v1137
    %1563 = vmatpush.bf16.msra.mxu0 %v1133
    %1564 = vmatpush.bf16.msra.mxu0 %v1129
    %1565 = vmatpush.bf16.msra.mxu0 %v1125
    %1566 = vmatpush.bf16.msra.mxu0 %v1121
    %1567 = vmatpush.bf16.msra.mxu0 %v1117
    %1568 = vmatmul.bf16.gmra.mxu0 %v275
    %v1569 = vpop.f32.mrf.mxu0
    %v1570 = vadd.f32 %v1557, %v1569
    %v1571 = vpop.f32.mrf.mxu0
    %1572 = vdwg.mxu0
    %1573 = vmatpush.bf16.msra.mxu0 %v1177
    %1574 = vmatpush.bf16.msra.mxu0 %v1173
    %1575 = vmatpush.bf16.msra.mxu0 %v1169
    %1576 = vmatpush.bf16.msra.mxu0 %v1165
    %1577 = vmatpush.bf16.msra.mxu0 %v1161
    %1578 = vmatpush.bf16.msra.mxu0 %v1157
    %1579 = vmatpush.bf16.msra.mxu0 %v1153
    %1580 = vmatpush.bf16.msra.mxu0 %v1149
    %1581 = vmatmul.bf16.gmra.mxu0 %v276
    %v1582 = vpop.f32.mrf.mxu0
    %v1583 = vadd.f32 %v1570, %v1582
    %v1584 = vpop.f32.mrf.mxu0
    %1585 = vdwg.mxu0
    %1586 = vmatpush.bf16.msra.mxu0 %v986
    %1587 = vmatpush.bf16.msra.mxu0 %v982
    %1588 = vmatpush.bf16.msra.mxu0 %v978
    %1589 = vmatpush.bf16.msra.mxu0 %v974
    %1590 = vmatpush.bf16.msra.mxu0 %v970
    %1591 = vmatpush.bf16.msra.mxu0 %v966
    %1592 = vmatpush.bf16.msra.mxu0 %v962
    %1593 = vmatpush.bf16.msra.mxu0 %v958
    %1594 = vmatmul.bf16.gmra.mxu0 %v270
    %v1595 = vpop.f32.mrf.mxu0
    %v1596 = vadd.f32 %v253, %v1595
    %v1597 = vpop.f32.mrf.mxu0
    %1598 = vdwg.mxu0
    %1599 = vmatpush.bf16.msra.mxu0 %v1018
    %1600 = vmatpush.bf16.msra.mxu0 %v1014
    %1601 = vmatpush.bf16.msra.mxu0 %v1010
    %1602 = vmatpush.bf16.msra.mxu0 %v1006
    %1603 = vmatpush.bf16.msra.mxu0 %v1002
    %1604 = vmatpush.bf16.msra.mxu0 %v998
    %1605 = vmatpush.bf16.msra.mxu0 %v994
    %1606 = vmatpush.bf16.msra.mxu0 %v990
    %1607 = vmatmul.bf16.gmra.mxu0 %v271
    %v1608 = vpop.f32.mrf.mxu0
    %v1609 = vadd.f32 %v1596, %v1608
    %v1610 = vpop.f32.mrf.mxu0
    %1611 = vdwg.mxu0
    %1612 = vmatpush.bf16.msra.mxu0 %v1050
    %1613 = vmatpush.bf16.msra.mxu0 %v1046
    %1614 = vmatpush.bf16.msra.mxu0 %v1042
    %1615 = vmatpush.bf16.msra.mxu0 %v1038
    %1616 = vmatpush.bf16.msra.mxu0 %v1034
    %1617 = vmatpush.bf16.msra.mxu0 %v1030
    %1618 = vmatpush.bf16.msra.mxu0 %v1026
    %1619 = vmatpush.bf16.msra.mxu0 %v1022
    %1620 = vmatmul.bf16.gmra.mxu0 %v272
    %v1621 = vpop.f32.mrf.mxu0
    %v1622 = vadd.f32 %v1609, %v1621
    %v1623 = vpop.f32.mrf.mxu0
    %1624 = vdwg.mxu0
    %1625 = vmatpush.bf16.msra.mxu0 %v1082
    %1626 = vmatpush.bf16.msra.mxu0 %v1078
    %1627 = vmatpush.bf16.msra.mxu0 %v1074
    %1628 = vmatpush.bf16.msra.mxu0 %v1070
    %1629 = vmatpush.bf16.msra.mxu0 %v1066
    %1630 = vmatpush.bf16.msra.mxu0 %v1062
    %1631 = vmatpush.bf16.msra.mxu0 %v1058
    %1632 = vmatpush.bf16.msra.mxu0 %v1054
    %1633 = vmatmul.bf16.gmra.mxu0 %v273
    %v1634 = vpop.f32.mrf.mxu0
    %v1635 = vadd.f32 %v1622, %v1634
    %v1636 = vpop.f32.mrf.mxu0
    %1637 = vdwg.mxu0
    %1638 = vmatpush.bf16.msra.mxu0 %v1114
    %1639 = vmatpush.bf16.msra.mxu0 %v1110
    %1640 = vmatpush.bf16.msra.mxu0 %v1106
    %1641 = vmatpush.bf16.msra.mxu0 %v1102
    %1642 = vmatpush.bf16.msra.mxu0 %v1098
    %1643 = vmatpush.bf16.msra.mxu0 %v1094
    %1644 = vmatpush.bf16.msra.mxu0 %v1090
    %1645 = vmatpush.bf16.msra.mxu0 %v1086
    %1646 = vmatmul.bf16.gmra.mxu0 %v274
    %v1647 = vpop.f32.mrf.mxu0
    %v1648 = vadd.f32 %v1635, %v1647
    %v1649 = vpop.f32.mrf.mxu0
    %1650 = vdwg.mxu0
    %1651 = vmatpush.bf16.msra.mxu0 %v1146
    %1652 = vmatpush.bf16.msra.mxu0 %v1142
    %1653 = vmatpush.bf16.msra.mxu0 %v1138
    %1654 = vmatpush.bf16.msra.mxu0 %v1134
    %1655 = vmatpush.bf16.msra.mxu0 %v1130
    %1656 = vmatpush.bf16.msra.mxu0 %v1126
    %1657 = vmatpush.bf16.msra.mxu0 %v1122
    %1658 = vmatpush.bf16.msra.mxu0 %v1118
    %1659 = vmatmul.bf16.gmra.mxu0 %v275
    %v1660 = vpop.f32.mrf.mxu0
    %v1661 = vadd.f32 %v1648, %v1660
    %v1662 = vpop.f32.mrf.mxu0
    %1663 = vdwg.mxu0
    %1664 = vmatpush.bf16.msra.mxu0 %v1178
    %1665 = vmatpush.bf16.msra.mxu0 %v1174
    %1666 = vmatpush.bf16.msra.mxu0 %v1170
    %1667 = vmatpush.bf16.msra.mxu0 %v1166
    %1668 = vmatpush.bf16.msra.mxu0 %v1162
    %1669 = vmatpush.bf16.msra.mxu0 %v1158
    %1670 = vmatpush.bf16.msra.mxu0 %v1154
    %1671 = vmatpush.bf16.msra.mxu0 %v1150
    %1672 = vmatmul.bf16.gmra.mxu0 %v276
    %v1673 = vpop.f32.mrf.mxu0
    %v1674 = vadd.f32 %v1661, %v1673
    %v1675 = vpop.f32.mrf.mxu0
    %1676 = vdwg.mxu0
    %1677 = vmatpush.bf16.msra.mxu0 %v987
    %1678 = vmatpush.bf16.msra.mxu0 %v983
    %1679 = vmatpush.bf16.msra.mxu0 %v979
    %1680 = vmatpush.bf16.msra.mxu0 %v975
    %1681 = vmatpush.bf16.msra.mxu0 %v971
    %1682 = vmatpush.bf16.msra.mxu0 %v967
    %1683 = vmatpush.bf16.msra.mxu0 %v963
    %1684 = vmatpush.bf16.msra.mxu0 %v959
    %1685 = vmatmul.bf16.gmra.mxu0 %v270
    %v1686 = vpop.f32.mrf.mxu0
    %v1687 = vadd.f32 %v254, %v1686
    %v1688 = vpop.f32.mrf.mxu0
    %1689 = vdwg.mxu0
    %1690 = vmatpush.bf16.msra.mxu0 %v1019
    %1691 = vmatpush.bf16.msra.mxu0 %v1015
    %1692 = vmatpush.bf16.msra.mxu0 %v1011
    %1693 = vmatpush.bf16.msra.mxu0 %v1007
    %1694 = vmatpush.bf16.msra.mxu0 %v1003
    %1695 = vmatpush.bf16.msra.mxu0 %v999
    %1696 = vmatpush.bf16.msra.mxu0 %v995
    %1697 = vmatpush.bf16.msra.mxu0 %v991
    %1698 = vmatmul.bf16.gmra.mxu0 %v271
    %v1699 = vpop.f32.mrf.mxu0
    %v1700 = vadd.f32 %v1687, %v1699
    %v1701 = vpop.f32.mrf.mxu0
    %1702 = vdwg.mxu0
    %1703 = vmatpush.bf16.msra.mxu0 %v1051
    %1704 = vmatpush.bf16.msra.mxu0 %v1047
    %1705 = vmatpush.bf16.msra.mxu0 %v1043
    %1706 = vmatpush.bf16.msra.mxu0 %v1039
    %1707 = vmatpush.bf16.msra.mxu0 %v1035
    %1708 = vmatpush.bf16.msra.mxu0 %v1031
    %1709 = vmatpush.bf16.msra.mxu0 %v1027
    %1710 = vmatpush.bf16.msra.mxu0 %v1023
    %1711 = vmatmul.bf16.gmra.mxu0 %v272
    %v1712 = vpop.f32.mrf.mxu0
    %v1713 = vadd.f32 %v1700, %v1712
    %v1714 = vpop.f32.mrf.mxu0
    %1715 = vdwg.mxu0
    %1716 = vmatpush.bf16.msra.mxu0 %v1083
    %1717 = vmatpush.bf16.msra.mxu0 %v1079
    %1718 = vmatpush.bf16.msra.mxu0 %v1075
    %1719 = vmatpush.bf16.msra.mxu0 %v1071
    %1720 = vmatpush.bf16.msra.mxu0 %v1067
    %1721 = vmatpush.bf16.msra.mxu0 %v1063
    %1722 = vmatpush.bf16.msra.mxu0 %v1059
    %1723 = vmatpush.bf16.msra.mxu0 %v1055
    %1724 = vmatmul.bf16.gmra.mxu0 %v273
    %v1725 = vpop.f32.mrf.mxu0
    %v1726 = vadd.f32 %v1713, %v1725
    %v1727 = vpop.f32.mrf.mxu0
    %1728 = vdwg.mxu0
    %1729 = vmatpush.bf16.msra.mxu0 %v1115
    %1730 = vmatpush.bf16.msra.mxu0 %v1111
    %1731 = vmatpush.bf16.msra.mxu0 %v1107
    %1732 = vmatpush.bf16.msra.mxu0 %v1103
    %1733 = vmatpush.bf16.msra.mxu0 %v1099
    %1734 = vmatpush.bf16.msra.mxu0 %v1095
    %1735 = vmatpush.bf16.msra.mxu0 %v1091
    %1736 = vmatpush.bf16.msra.mxu0 %v1087
    %1737 = vmatmul.bf16.gmra.mxu0 %v274
    %v1738 = vpop.f32.mrf.mxu0
    %v1739 = vadd.f32 %v1726, %v1738
    %v1740 = vpop.f32.mrf.mxu0
    %1741 = vdwg.mxu0
    %1742 = vmatpush.bf16.msra.mxu0 %v1147
    %1743 = vmatpush.bf16.msra.mxu0 %v1143
    %1744 = vmatpush.bf16.msra.mxu0 %v1139
    %1745 = vmatpush.bf16.msra.mxu0 %v1135
    %1746 = vmatpush.bf16.msra.mxu0 %v1131
    %1747 = vmatpush.bf16.msra.mxu0 %v1127
    %1748 = vmatpush.bf16.msra.mxu0 %v1123
    %1749 = vmatpush.bf16.msra.mxu0 %v1119
    %1750 = vmatmul.bf16.gmra.mxu0 %v275
    %v1751 = vpop.f32.mrf.mxu0
    %v1752 = vadd.f32 %v1739, %v1751
    %v1753 = vpop.f32.mrf.mxu0
    %1754 = vdwg.mxu0
    %1755 = vmatpush.bf16.msra.mxu0 %v1179
    %1756 = vmatpush.bf16.msra.mxu0 %v1175
    %1757 = vmatpush.bf16.msra.mxu0 %v1171
    %1758 = vmatpush.bf16.msra.mxu0 %v1167
    %1759 = vmatpush.bf16.msra.mxu0 %v1163
    %1760 = vmatpush.bf16.msra.mxu0 %v1159
    %1761 = vmatpush.bf16.msra.mxu0 %v1155
    %1762 = vmatpush.bf16.msra.mxu0 %v1151
    %1763 = vmatmul.bf16.gmra.mxu0 %v276
    %v1764 = vpop.f32.mrf.mxu0
    %v1765 = vadd.f32 %v1752, %v1764
    %v1766 = vpop.f32.mrf.mxu0
    %1767 = vdwg.mxu0
    %v1768 = vtanh.pop %v1492
    %v1769 = vtanh.pop %v1583
    %v1770 = vtanh.pop %v1674
    %v1771 = vtanh.pop %v1765
    %v1772 = vpack.c.bf16 %v1768, %v1768
    %v1773 = vpack.c.bf16 %v1769, %v1769
    %v1774 = vpack.c.bf16 %v1770, %v1770
    %v1775 = vpack.c.bf16 %v1771, %v1771
    %v1776 = vld [vmem:[%s3] sm:$0xf]
    %v1777 = vld [vmem:[%s3 + $0x4] sm:$0xf]
    %v1778 = vld [vmem:[%s3 + $0x8] sm:$0xf]
    %v1779 = vld [vmem:[%s3 + $0xc] sm:$0xf]
    %v1780 = vld [vmem:[%s3 + $0x10] sm:$0xf]
    %v1781 = vld [vmem:[%s3 + $0x14] sm:$0xf]
    %v1782 = vld [vmem:[%s3 + $0x18] sm:$0xf]
    %v1783 = vld [vmem:[%s3 + $0x1c] sm:$0xf]
    %v1784 = vld [vmem:[%s3 + $0x20] sm:$0xf]
    %v1785 = vld [vmem:[%s3 + $0x24] sm:$0xf]
    %v1786 = vld [vmem:[%s3 + $0x28] sm:$0xf]
    %v1787 = vld [vmem:[%s3 + $0x2c] sm:$0xf]
    %v1788 = vld [vmem:[%s3 + $0x30] sm:$0xf]
    %v1789 = vld [vmem:[%s3 + $0x34] sm:$0xf]
    %v1790 = vld [vmem:[%s3 + $0x38] sm:$0xf]
    %v1791 = vld [vmem:[%s3 + $0x3c] sm:$0xf]
    %v1792 = vld [vmem:[%s3 + $0x40] sm:$0xf]
    %v1793 = vld [vmem:[%s3 + $0x44] sm:$0xf]
    %v1794 = vld [vmem:[%s3 + $0x48] sm:$0xf]
    %v1795 = vld [vmem:[%s3 + $0x4c] sm:$0xf]
    %v1796 = vld [vmem:[%s3 + $0x50] sm:$0xf]
    %v1797 = vld [vmem:[%s3 + $0x54] sm:$0xf]
    %v1798 = vld [vmem:[%s3 + $0x58] sm:$0xf]
    %v1799 = vld [vmem:[%s3 + $0x5c] sm:$0xf]
    %v1800 = vld [vmem:[%s3 + $0x60] sm:$0xf]
    %v1801 = vld [vmem:[%s3 + $0x64] sm:$0xf]
    %v1802 = vld [vmem:[%s3 + $0x68] sm:$0xf]
    %v1803 = vld [vmem:[%s3 + $0x6c] sm:$0xf]
    %v1804 = vld [vmem:[%s3 + $0x70] sm:$0xf]
    %v1805 = vld [vmem:[%s3 + $0x74] sm:$0xf]
    %v1806 = vld [vmem:[%s3 + $0x78] sm:$0xf]
    %v1807 = vld [vmem:[%s3 + $0x7c] sm:$0xf]
    %v1808 = vld [vmem:[%s3 + $0x80] sm:$0xf]
    %v1809 = vld [vmem:[%s3 + $0x84] sm:$0xf]
    %v1810 = vld [vmem:[%s3 + $0x88] sm:$0xf]
    %v1811 = vld [vmem:[%s3 + $0x8c] sm:$0xf]
    %v1812 = vld [vmem:[%s3 + $0x90] sm:$0xf]
    %v1813 = vld [vmem:[%s3 + $0x94] sm:$0xf]
    %v1814 = vld [vmem:[%s3 + $0x98] sm:$0xf]
    %v1815 = vld [vmem:[%s3 + $0x9c] sm:$0xf]
    %v1816 = vld [vmem:[%s3 + $0xa0] sm:$0xf]
    %v1817 = vld [vmem:[%s3 + $0xa4] sm:$0xf]
    %v1818 = vld [vmem:[%s3 + $0xa8] sm:$0xf]
    %v1819 = vld [vmem:[%s3 + $0xac] sm:$0xf]
    %v1820 = vld [vmem:[%s3 + $0xb0] sm:$0xf]
    %v1821 = vld [vmem:[%s3 + $0xb4] sm:$0xf]
    %v1822 = vld [vmem:[%s3 + $0xb8] sm:$0xf]
    %v1823 = vld [vmem:[%s3 + $0xbc] sm:$0xf]
    %v1824 = vld [vmem:[%s3 + $0xc0] sm:$0xf]
    %v1825 = vld [vmem:[%s3 + $0xc4] sm:$0xf]
    %v1826 = vld [vmem:[%s3 + $0xc8] sm:$0xf]
    %v1827 = vld [vmem:[%s3 + $0xcc] sm:$0xf]
    %v1828 = vld [vmem:[%s3 + $0xd0] sm:$0xf]
    %v1829 = vld [vmem:[%s3 + $0xd4] sm:$0xf]
    %v1830 = vld [vmem:[%s3 + $0xd8] sm:$0xf]
    %v1831 = vld [vmem:[%s3 + $0xdc] sm:$0xf]
    %v1832 = vld [vmem:[%s3 + $0xe0] sm:$0xf]
    %v1833 = vld [vmem:[%s3 + $0xe4] sm:$0xf]
    %v1834 = vld [vmem:[%s3 + $0xe8] sm:$0xf]
    %v1835 = vld [vmem:[%s3 + $0xec] sm:$0xf]
    %v1836 = vld [vmem:[%s3 + $0xf0] sm:$0xf]
    %v1837 = vld [vmem:[%s3 + $0xf4] sm:$0xf]
    %v1838 = vld [vmem:[%s3 + $0xf8] sm:$0xf]
    %v1839 = vld [vmem:[%s3 + $0xfc] sm:$0xf]
    %v1840 = vld [vmem:[%s4] sm:$0x1]
    %v1842 = vperm.slane %v1840, 0
    %v1908 = vunpack.c.l.b16 %v1776
    %v1909 = vunpack.c.l.b16 %v1777
    %v1910 = vunpack.c.l.b16 %v1778
    %v1911 = vunpack.c.l.b16 %v1779
    %v1912 = vunpack.c.l.b16 %v1780
    %v1913 = vunpack.c.l.b16 %v1781
    %v1914 = vunpack.c.l.b16 %v1782
    %v1915 = vunpack.c.l.b16 %v1783
    %v1916 = vunpack.c.l.b16 %v1784
    %v1917 = vunpack.c.l.b16 %v1785
    %v1918 = vunpack.c.l.b16 %v1786
    %v1919 = vunpack.c.l.b16 %v1787
    %v1920 = vunpack.c.l.b16 %v1788
    %v1921 = vunpack.c.l.b16 %v1789
    %v1922 = vunpack.c.l.b16 %v1790
    %v1923 = vunpack.c.l.b16 %v1791
    %v1924 = vunpack.c.l.b16 %v1792
    %v1925 = vunpack.c.l.b16 %v1793
    %v1926 = vunpack.c.l.b16 %v1794
    %v1927 = vunpack.c.l.b16 %v1795
    %v1928 = vunpack.c.l.b16 %v1796
    %v1929 = vunpack.c.l.b16 %v1797
    %v1930 = vunpack.c.l.b16 %v1798
    %v1931 = vunpack.c.l.b16 %v1799
    %v1932 = vunpack.c.l.b16 %v1800
    %v1933 = vunpack.c.l.b16 %v1801
    %v1934 = vunpack.c.l.b16 %v1802
    %v1935 = vunpack.c.l.b16 %v1803
    %v1936 = vunpack.c.l.b16 %v1804
    %v1937 = vunpack.c.l.b16 %v1805
    %v1938 = vunpack.c.l.b16 %v1806
    %v1939 = vunpack.c.l.b16 %v1807
    %v1940 = vunpack.c.l.b16 %v1808
    %v1941 = vunpack.c.l.b16 %v1809
    %v1942 = vunpack.c.l.b16 %v1810
    %v1943 = vunpack.c.l.b16 %v1811
    %v1944 = vunpack.c.l.b16 %v1812
    %v1945 = vunpack.c.l.b16 %v1813
    %v1946 = vunpack.c.l.b16 %v1814
    %v1947 = vunpack.c.l.b16 %v1815
    %v1948 = vunpack.c.l.b16 %v1816
    %v1949 = vunpack.c.l.b16 %v1817
    %v1950 = vunpack.c.l.b16 %v1818
    %v1951 = vunpack.c.l.b16 %v1819
    %v1952 = vunpack.c.l.b16 %v1820
    %v1953 = vunpack.c.l.b16 %v1821
    %v1954 = vunpack.c.l.b16 %v1822
    %v1955 = vunpack.c.l.b16 %v1823
    %v1956 = vunpack.c.l.b16 %v1824
    %v1957 = vunpack.c.l.b16 %v1825
    %v1958 = vunpack.c.l.b16 %v1826
    %v1959 = vunpack.c.l.b16 %v1827
    %v1960 = vunpack.c.l.b16 %v1828
    %v1961 = vunpack.c.l.b16 %v1829
    %v1962 = vunpack.c.l.b16 %v1830
    %v1963 = vunpack.c.l.b16 %v1831
    %v1964 = vunpack.c.l.b16 %v1832
    %v1965 = vunpack.c.l.b16 %v1833
    %v1966 = vunpack.c.l.b16 %v1834
    %v1967 = vunpack.c.l.b16 %v1835
    %v1968 = vunpack.c.l.b16 %v1836
    %v1969 = vunpack.c.l.b16 %v1837
    %v1970 = vunpack.c.l.b16 %v1838
    %v1971 = vunpack.c.l.b16 %v1839
    %v1972 = vpack.c.b16 %v1909, %v1908
    %v1973 = vpack.c.b16 %v1911, %v1910
    %v1974 = vpack.c.b16 %v1913, %v1912
    %v1975 = vpack.c.b16 %v1915, %v1914
    %v1976 = vpack.c.b16 %v1917, %v1916
    %v1977 = vpack.c.b16 %v1919, %v1918
    %v1978 = vpack.c.b16 %v1921, %v1920
    %v1979 = vpack.c.b16 %v1923, %v1922
    %v1980 = vpack.c.b16 %v1925, %v1924
    %v1981 = vpack.c.b16 %v1927, %v1926
    %v1982 = vpack.c.b16 %v1929, %v1928
    %v1983 = vpack.c.b16 %v1931, %v1930
    %v1984 = vpack.c.b16 %v1933, %v1932
    %v1985 = vpack.c.b16 %v1935, %v1934
    %v1986 = vpack.c.b16 %v1937, %v1936
    %v1987 = vpack.c.b16 %v1939, %v1938
    %v1988 = vpack.c.b16 %v1941, %v1940
    %v1989 = vpack.c.b16 %v1943, %v1942
    %v1990 = vpack.c.b16 %v1945, %v1944
    %v1991 = vpack.c.b16 %v1947, %v1946
    %v1992 = vpack.c.b16 %v1949, %v1948
    %v1993 = vpack.c.b16 %v1951, %v1950
    %v1994 = vpack.c.b16 %v1953, %v1952
    %v1995 = vpack.c.b16 %v1955, %v1954
    %v1996 = vpack.c.b16 %v1957, %v1956
    %v1997 = vpack.c.b16 %v1959, %v1958
    %v1998 = vpack.c.b16 %v1961, %v1960
    %v1999 = vpack.c.b16 %v1963, %v1962
    %v2000 = vpack.c.b16 %v1965, %v1964
    %v2001 = vpack.c.b16 %v1967, %v1966
    %v2002 = vpack.c.b16 %v1969, %v1968
    %v2003 = vpack.c.b16 %v1971, %v1970
    %2036 = vmatpush.bf16.msra.mxu0 %v1979
    %2037 = vmatpush.bf16.msra.mxu0 %v1978
    %2038 = vmatpush.bf16.msra.mxu0 %v1977
    %2039 = vmatpush.bf16.msra.mxu0 %v1976
    %2040 = vmatpush.bf16.msra.mxu0 %v1975
    %2041 = vmatpush.bf16.msra.mxu0 %v1974
    %2042 = vmatpush.bf16.msra.mxu0 %v1973
    %2043 = vmatpush.bf16.msra.mxu0 %v1972
    %2044 = vmatmul.bf16.gmra.mxu0 %v1772
    %v2045 = vpop.f32.mrf.mxu0
    %v2046 = vadd.f32 %v1842, %v2045
    %v2047 = vpop.f32.mrf.mxu0
    %2048 = vdwg.mxu0
    %2049 = vmatpush.bf16.msra.mxu0 %v1987
    %2050 = vmatpush.bf16.msra.mxu0 %v1986
    %2051 = vmatpush.bf16.msra.mxu0 %v1985
    %2052 = vmatpush.bf16.msra.mxu0 %v1984
    %2053 = vmatpush.bf16.msra.mxu0 %v1983
    %2054 = vmatpush.bf16.msra.mxu0 %v1982
    %2055 = vmatpush.bf16.msra.mxu0 %v1981
    %2056 = vmatpush.bf16.msra.mxu0 %v1980
    %2057 = vmatmul.bf16.gmra.mxu0 %v1773
    %v2058 = vpop.f32.mrf.mxu0
    %v2059 = vadd.f32 %v2046, %v2058
    %v2060 = vpop.f32.mrf.mxu0
    %2061 = vdwg.mxu0
    %2062 = vmatpush.bf16.msra.mxu0 %v1995
    %2063 = vmatpush.bf16.msra.mxu0 %v1994
    %2064 = vmatpush.bf16.msra.mxu0 %v1993
    %2065 = vmatpush.bf16.msra.mxu0 %v1992
    %2066 = vmatpush.bf16.msra.mxu0 %v1991
    %2067 = vmatpush.bf16.msra.mxu0 %v1990
    %2068 = vmatpush.bf16.msra.mxu0 %v1989
    %2069 = vmatpush.bf16.msra.mxu0 %v1988
    %2070 = vmatmul.bf16.gmra.mxu0 %v1774
    %v2071 = vpop.f32.mrf.mxu0
    %v2072 = vadd.f32 %v2059, %v2071
    %v2073 = vpop.f32.mrf.mxu0
    %2074 = vdwg.mxu0
    %2075 = vmatpush.bf16.msra.mxu0 %v2003
    %2076 = vmatpush.bf16.msra.mxu0 %v2002
    %2077 = vmatpush.bf16.msra.mxu0 %v2001
    %2078 = vmatpush.bf16.msra.mxu0 %v2000
    %2079 = vmatpush.bf16.msra.mxu0 %v1999
    %2080 = vmatpush.bf16.msra.mxu0 %v1998
    %2081 = vmatpush.bf16.msra.mxu0 %v1997
    %2082 = vmatpush.bf16.msra.mxu0 %v1996
    %2083 = vmatmul.bf16.gmra.mxu0 %v1775
    %v2084 = vpop.f32.mrf.mxu0
    %v2085 = vadd.f32 %v2072, %v2084
    %v2086 = vpop.f32.mrf.mxu0
    %2087 = vdwg.mxu0
    %2088 = vst [vmem:[#allocation2] sm:$0xff] %v2085
    // Predicated region
    $region22: #{mlp_forward.1} parent=1 // pred_check
      _
    $region23: #{mlp_forward.1} parent=1 // pred_check_branch
      %2090 = sbr.rel (0) target = $region25
    $region24: #{mlp_forward.1} parent=1 // pred_region
      %2092 = vsyncadd [#allocation3], 0
      %s2094 = sshll.u32 [#allocation2], 4
      %s2095 = int_to_ptr.vmem [resolvable:$true] %s2094
      %s2096 = sshll.u32 %s5, 4
      %s2097 = int_to_ptr.hbm [resolvable:$true] %s2096
      %2099 = dma.vmem_to_hbm [thread:$0]  %s2095, 128, %s2097, [#allocation3]
    $region25: #{mlp_forward.1} parent=1 // pred_fallthru
      _
    // Predicated region
    $region26: #{mlp_forward.1} parent=1 // pred_check
      _
    $region27: #{mlp_forward.1} parent=1 // pred_check_branch
      %2101 = sbr.rel (0) target = $region29
    $region28: #{mlp_forward.1} parent=1 // pred_region
      %2103 = dma.done [#allocation3], 128
    $region29: #{mlp_forward.1} parent=1 // pred_fallthru
      _
    %2104 = vsyncpa [#allocation3], 1

</llo_original>
